<compile_context>
chip_gen: v6e
topology: v6e:2x2x1
jax: 0.10.0
libtpu: 0.0.40
codegen_flags: <defaults>
</compile_context>

<pallas_src>
import jax
import jax.numpy as jnp
from jax.experimental import pallas as pl
from jax.experimental.pallas import tpu as pltpu


def _round_up(n, m):
    return ((n + m - 1) // m) * m


_MAX_TILE_B = 8192        # keeps per-step VMEM footprint far under the scoped limit
_MIN_PER_CORE_TILE = 256  # don't split the batch if a core would get fewer rows


def _chip_info():
    """(num_tensorcores, prefer_bf16) from the device kind, conservatively."""
    try:
        kind = jax.devices()[0].device_kind.lower()
    except Exception:
        return 1, False
    # Single-TC inference parts.
    if "lite" in kind or "v5e" in kind or "v6" in kind:
        num_cores = 1
    # Megacore / dual-TC parts (v4, v5p, v7x).
    elif "v4" in kind or "v5" in kind or "v7" in kind:
        num_cores = 2
    else:
        num_cores = 1
    # bf16 operand streaming pays off on v6e / v7x (native bf16 MXU path).
    prefer_bf16 = ("v6" in kind) or ("v7" in kind)
    return num_cores, prefer_bf16


def _pick_tile_b(batch, num_cores):
    """Batch tile: one grid step on 1-TC chips; one step per core on multi-TC
    chips when each core gets >= _MIN_PER_CORE_TILE rows; capped for VMEM."""
    b8 = _round_up(max(batch, 8), 8)
    if num_cores > 1 and b8 >= num_cores * _MIN_PER_CORE_TILE:
        tile = _round_up(pl.cdiv(b8, num_cores), 8)
    else:
        tile = b8
    tile = min(tile, _MAX_TILE_B)
    b_pad = _round_up(b8, tile)
    return tile, b_pad


def qnet_kernel(x_ref, w1_ref, b1_ref, w2_ref, b2_ref, w3_ref, b3_ref, o_ref):
    # Whole MLP hot path runs out of VMEM on the MXU/VPU.  Dots accumulate in
    # f32 even when x / weights are streamed as bf16; bias-add and ReLU stay f32.
    x = x_ref[...]
    h1 = jnp.dot(x, w1_ref[...], preferred_element_type=jnp.float32) + b1_ref[...]
    h1 = jnp.maximum(h1, 0.0)
    h2 = (
        jnp.dot(h1.astype(w2_ref.dtype), w2_ref[...], preferred_element_type=jnp.float32)
        + b2_ref[...]
    )
    h2 = jnp.maximum(h2, 0.0)
    o_ref[...] = (
        jnp.dot(h2.astype(w3_ref.dtype), w3_ref[...], preferred_element_type=jnp.float32)
        + b3_ref[...]
    ).astype(o_ref.dtype)


def _forward_call(x_p, w1, b1, w2, b2, w3, b3, *, tile_b):
    b_pad, in_dim = x_p.shape
    out_dim = w3.shape[1]
    grid = (b_pad // tile_b,)

    def const_spec(arr):
        # Constant index map -> weights/biases stay resident across grid steps.
        return pl.BlockSpec(arr.shape, lambda i: (0, 0))

    flops = 2 * b_pad * (
        w1.shape[0] * w1.shape[1]
        + w2.shape[0] * w2.shape[1]
        + w3.shape[0] * w3.shape[1]
    )
    bytes_accessed = (
        int(x_p.size) * x_p.dtype.itemsize
        + b_pad * out_dim * 4
        + sum(int(a.size) * a.dtype.itemsize for a in (w1, b1, w2, b2, w3, b3))
    )

    return pl.pallas_call(
        qnet_kernel,
        out_shape=jax.ShapeDtypeStruct((b_pad, out_dim), jnp.float32),
        grid_spec=pltpu.PrefetchScalarGridSpec(
            num_scalar_prefetch=0,
            grid=grid,
            in_specs=[
                pl.BlockSpec((tile_b, in_dim), lambda i: (i, 0)),
                const_spec(w1),
                const_spec(b1),
                const_spec(w2),
                const_spec(b2),
                const_spec(w3),
                const_spec(b3),
            ],
            # OUT (e.g. 4) is the full array dim, so a (tile_b, OUT) block is
            # legal; the masked store on a tiny action dim beats writing (and
            # re-reading to slice) a 128-lane padded slab.
            out_specs=pl.BlockSpec((tile_b, out_dim), lambda i: (i, 0)),
        ),
        # Batch steps are independent; on multi-TC chips "parallel" shards the
        # grid axis across TensorCores, on 1-TC chips the grid is a single step.
        compiler_params=pltpu.CompilerParams(dimension_semantics=("parallel",)),
        cost_estimate=pl.CostEstimate(
            flops=flops, transcendentals=0, bytes_accessed=bytes_accessed
        ),
    )(x_p, w1, b1, w2, b2, w3, b3)


def qnetwork_forward(x, params, *, compute_dtype=None):
    """x: (B, 2*input_units) float32. params: dict of transposed weights / 2-D biases.

    compute_dtype: None -> auto (bf16 operand streaming on v6e/v7x, f32 elsewhere);
    pass jnp.float32 / jnp.bfloat16 to force.
    """
    B, _ = x.shape
    w1, b1 = params["w1"], params["b1"]   # (IN, 64),   (1, 64)
    w2, b2 = params["w2"], params["b2"]   # (64, 128),  (1, 128)
    w3, b3 = params["w3"], params["b3"]   # (128, OUT), (1, OUT)

    num_cores, prefer_bf16 = _chip_info()
    if compute_dtype is None:
        compute_dtype = jnp.bfloat16 if prefer_bf16 else jnp.float32

    # Generation-aware batch tiling; zero-pad the batch to a multiple of it.
    tile, b_pad = _pick_tile_b(B, num_cores)
    x_p = x if b_pad == B else jnp.pad(x, ((0, b_pad - B), (0, 0)))

    # Optional bf16 streaming of x / weights (dots still accumulate in f32).
    if compute_dtype != jnp.float32:
        x_p = x_p.astype(compute_dtype)
        w1, w2, w3 = (w.astype(compute_dtype) for w in (w1, w2, w3))

    out = _forward_call(x_p, w1, b1, w2, b2, w3, b3, tile_b=tile)
    return out if b_pad == B else out[:B]


def init_params(key, input_units, output_units):
    """Deterministic init mirroring PyTorch Linear's U(-1/sqrt(fan_in), 1/sqrt(fan_in)).

    Weights are stored as (in_features, out_features) — already transposed
    relative to torch's (out, in) storage — so the kernel computes x @ W + b.
    """
    dims = [(2 * input_units, 64), (64, 128), (128, output_units)]
    params = {}
    for idx, (fan_in, fan_out) in enumerate(dims, start=1):
        key, kw, kb = jax.random.split(key, 3)
        bound = 1.0 / jnp.sqrt(jnp.float32(fan_in))
        params[f"w{idx}"] = jax.random.uniform(
            kw, (fan_in, fan_out), jnp.float32, minval=-bound, maxval=bound
        )
        params[f"b{idx}"] = jax.random.uniform(
            kb, (1, fan_out), jnp.float32, minval=-bound, maxval=bound
        )
    return params


def reference_forward(x, params):
    h1 = jnp.maximum(x @ params["w1"] + params["b1"], 0.0)
    h2 = jnp.maximum(h1 @ params["w2"] + params["b2"], 0.0)
    return h2 @ params["w3"] + params["b3"]


if __name__ == "__main__":
    input_units = 8       # state dim = 2 * input_units = 16 (HER concatenates goal)
    output_units = 4
    batch = 512           # typical DQN replay minibatch

    key = jax.random.PRNGKey(0)
    key, kx = jax.random.split(key)
    params = init_params(key, input_units, output_units)
    x = jax.random.normal(kx, (batch, 2 * input_units), dtype=jnp.float32)

    _, prefer_bf16 = _chip_info()
    # bf16 operand streaming loses a few mantissa bits vs the f32 reference.
    tol = dict(atol=3e-2, rtol=3e-2) if prefer_bf16 else dict(atol=1e-5, rtol=1e-5)

    out = jax.block_until_ready(qnetwork_forward(x, params))
    ref = reference_forward(x, params)
    assert out.shape == (batch, output_units)
    assert jnp.allclose(out, ref, **tol), "mismatch vs JAX reference"

    # Ragged small batch exercises the single-step tiny-tile / batch-padding path.
    x_small = x[:10]
    out_small = jax.block_until_ready(qnetwork_forward(x_small, params))
    assert out_small.shape == (10, output_units)
    assert jnp.allclose(
        out_small, reference_forward(x_small, params), **tol
    ), "mismatch vs JAX reference (small batch)"

    print("KERNEL_OK")
</pallas_src>

<mosaic_0001>
module attributes {stable_mosaic.version = 11 : i64} {
  func.func @qnet_kernel(%arg0: i32, %arg1: memref<512x16xf32, #tpu.memory_space<vmem>>, %arg2: memref<16x64xf32, #tpu.memory_space<vmem>>, %arg3: memref<1x64xf32, #tpu.memory_space<vmem>>, %arg4: memref<64x128xf32, #tpu.memory_space<vmem>>, %arg5: memref<1x128xf32, #tpu.memory_space<vmem>>, %arg6: memref<128x4xf32, #tpu.memory_space<vmem>>, %arg7: memref<1x4xf32, #tpu.memory_space<vmem>>, %arg8: memref<512x4xf32, #tpu.memory_space<vmem>>) attributes {dimension_semantics = [#tpu.dimension_semantics<parallel>], iteration_bounds = array<i64: 1>, scalar_prefetch = 0 : i64, scratch_operands = 0 : i64, tpu.core_type = #tpu.core_type<tc>, window_params = [{transform_indices = @transform_0, window_bounds = array<i64: 512, 16>}, {pipeline_mode = #tpu.pipeline_mode<synchronous>, transform_indices = @transform_1, window_bounds = array<i64: 16, 64>}, {pipeline_mode = #tpu.pipeline_mode<synchronous>, transform_indices = @transform_2, window_bounds = array<i64: 1, 64>}, {pipeline_mode = #tpu.pipeline_mode<synchronous>, transform_indices = @transform_3, window_bounds = array<i64: 64, 128>}, {pipeline_mode = #tpu.pipeline_mode<synchronous>, transform_indices = @transform_4, window_bounds = array<i64: 1, 128>}, {pipeline_mode = #tpu.pipeline_mode<synchronous>, transform_indices = @transform_5, window_bounds = array<i64: 128, 4>}, {pipeline_mode = #tpu.pipeline_mode<synchronous>, transform_indices = @transform_6, window_bounds = array<i64: 1, 4>}, {transform_indices = @transform_7, window_bounds = array<i64: 512, 4>}]} {
    %c0 = arith.constant 0 : index
    %c0_0 = arith.constant 0 : index
    %0 = vector.load %arg1[%c0, %c0_0] : memref<512x16xf32, #tpu.memory_space<vmem>>, vector<512x16xf32>
    %c0_1 = arith.constant 0 : index
    %c0_2 = arith.constant 0 : index
    %1 = vector.load %arg2[%c0_1, %c0_2] : memref<16x64xf32, #tpu.memory_space<vmem>>, vector<16x64xf32>
    %cst = arith.constant dense<0.000000e+00> : vector<512x64xf32>
    %2 = tpu.matmul %0, %1, %cst {dimension_numbers = #tpu.dot_dimension_numbers<[1], [0], [0], [1], [0, 0, 1, 1], [], []>} : vector<512x16xf32>, vector<16x64xf32>, vector<512x64xf32> -> vector<512x64xf32>
    %c0_3 = arith.constant 0 : index
    %c0_4 = arith.constant 0 : index
    %3 = vector.load %arg3[%c0_3, %c0_4] : memref<1x64xf32, #tpu.memory_space<vmem>>, vector<1x64xf32>
    %4 = vector.broadcast %3 : vector<1x64xf32> to vector<512x64xf32>
    %5 = arith.addf %2, %4 : vector<512x64xf32>
    %cst_5 = arith.constant 0.000000e+00 : f32
    %6 = vector.broadcast %cst_5 : f32 to vector<512x64xf32>
    %7 = arith.maximumf %5, %6 : vector<512x64xf32>
    %c0_6 = arith.constant 0 : index
    %c0_7 = arith.constant 0 : index
    %8 = vector.load %arg4[%c0_6, %c0_7] : memref<64x128xf32, #tpu.memory_space<vmem>>, vector<64x128xf32>
    %cst_8 = arith.constant dense<0.000000e+00> : vector<512x128xf32>
    %9 = tpu.matmul %7, %8, %cst_8 {dimension_numbers = #tpu.dot_dimension_numbers<[1], [0], [0], [1], [0, 0, 1, 1], [], []>} : vector<512x64xf32>, vector<64x128xf32>, vector<512x128xf32> -> vector<512x128xf32>
    %c0_9 = arith.constant 0 : index
    %c0_10 = arith.constant 0 : index
    %10 = vector.load %arg5[%c0_9, %c0_10] : memref<1x128xf32, #tpu.memory_space<vmem>>, vector<1x128xf32>
    %11 = vector.broadcast %10 : vector<1x128xf32> to vector<512x128xf32>
    %12 = arith.addf %9, %11 : vector<512x128xf32>
    %cst_11 = arith.constant 0.000000e+00 : f32
    %13 = vector.broadcast %cst_11 : f32 to vector<512x128xf32>
    %14 = arith.maximumf %12, %13 : vector<512x128xf32>
    %c0_12 = arith.constant 0 : index
    %c0_13 = arith.constant 0 : index
    %15 = vector.load %arg6[%c0_12, %c0_13] : memref<128x4xf32, #tpu.memory_space<vmem>>, vector<128x4xf32>
    %cst_14 = arith.constant dense<0.000000e+00> : vector<512x4xf32>
    %16 = tpu.matmul %14, %15, %cst_14 {dimension_numbers = #tpu.dot_dimension_numbers<[1], [0], [0], [1], [0, 0, 1, 1], [], []>} : vector<512x128xf32>, vector<128x4xf32>, vector<512x4xf32> -> vector<512x4xf32>
    %c0_15 = arith.constant 0 : index
    %c0_16 = arith.constant 0 : index
    %17 = vector.load %arg7[%c0_15, %c0_16] : memref<1x4xf32, #tpu.memory_space<vmem>>, vector<1x4xf32>
    %18 = vector.broadcast %17 : vector<1x4xf32> to vector<512x4xf32>
    %19 = arith.addf %16, %18 : vector<512x4xf32>
    %c0_17 = arith.constant 0 : index
    %c0_18 = arith.constant 0 : index
    %20 = vector.load %arg8[%c0_17, %c0_18] : memref<512x4xf32, #tpu.memory_space<vmem>>, vector<512x4xf32>
    tpu.vector_store %arg8[%c0_17, %c0_18], %19 {strides = array<i32>} : memref<512x4xf32, #tpu.memory_space<vmem>>, vector<512x4xf32>,
    return
  }
  func.func @transform_0(%arg0: i32) -> (i32, i32) {
    %c0_i32 = arith.constant 0 : i32
    %c0_i32_0 = arith.constant 0 : i32
    return %arg0, %c0_i32 : i32, i32
  }
  func.func @transform_1(%arg0: i32) -> (i32, i32) {
    %c0_i32 = arith.constant 0 : i32
    %c0_i32_0 = arith.constant 0 : i32
    %c0_i32_1 = arith.constant 0 : i32
    return %c0_i32, %c0_i32_0 : i32, i32
  }
  func.func @transform_2(%arg0: i32) -> (i32, i32) {
    %c0_i32 = arith.constant 0 : i32
    %c0_i32_0 = arith.constant 0 : i32
    %c0_i32_1 = arith.constant 0 : i32
    return %c0_i32, %c0_i32_0 : i32, i32
  }
  func.func @transform_3(%arg0: i32) -> (i32, i32) {
    %c0_i32 = arith.constant 0 : i32
    %c0_i32_0 = arith.constant 0 : i32
    %c0_i32_1 = arith.constant 0 : i32
    return %c0_i32, %c0_i32_0 : i32, i32
  }
  func.func @transform_4(%arg0: i32) -> (i32, i32) {
    %c0_i32 = arith.constant 0 : i32
    %c0_i32_0 = arith.constant 0 : i32
    %c0_i32_1 = arith.constant 0 : i32
    return %c0_i32, %c0_i32_0 : i32, i32
  }
  func.func @transform_5(%arg0: i32) -> (i32, i32) {
    %c0_i32 = arith.constant 0 : i32
    %c0_i32_0 = arith.constant 0 : i32
    %c0_i32_1 = arith.constant 0 : i32
    return %c0_i32, %c0_i32_0 : i32, i32
  }
  func.func @transform_6(%arg0: i32) -> (i32, i32) {
    %c0_i32 = arith.constant 0 : i32
    %c0_i32_0 = arith.constant 0 : i32
    %c0_i32_1 = arith.constant 0 : i32
    return %c0_i32, %c0_i32_0 : i32, i32
  }
  func.func @transform_7(%arg0: i32) -> (i32, i32) {
    %c0_i32 = arith.constant 0 : i32
    %c0_i32_0 = arith.constant 0 : i32
    return %arg0, %c0_i32 : i32, i32
  }
}

</mosaic_0001>

<llo_original>
// kernel: tpu_custom_call.1
$region0: #{tpu_custom_call.1}
  #allocation0 [shape = 'u32[]', space=smem, size = 0x4, offset = 0x4, fixed_abs, tag = 'smem constant byte address 0x4 - core index']
  #allocation1 [shape = 'u32[144,128]{1,0:T(1,128)}', space=vmem, size = 0x12000, scoped, tag = 'internal scratch']
  %s0 = inlined_call_operand.vmem [shape: f32[512,16], index: 0, kind: input, shape index: {}]
  %s1 = inlined_call_operand.vmem [shape: f32[16,64], index: 1, kind: input, shape index: {}]
  %s2 = inlined_call_operand.vmem [shape: f32[1,64], index: 2, kind: input, shape index: {}]
  %s3 = inlined_call_operand.vmem [shape: f32[64,128], index: 3, kind: input, shape index: {}]
  %s4 = inlined_call_operand.vmem [shape: f32[1,128], index: 4, kind: input, shape index: {}]
  %s5 = inlined_call_operand.vmem [shape: f32[128,4], index: 5, kind: input, shape index: {}]
  %s6 = inlined_call_operand.vmem [shape: f32[1,4], index: 6, kind: input, shape index: {}]
  %s7 = inlined_call_operand.vmem [shape: f32[512,4], index: 7, kind: output, shape index: {}]
  %s8 = sld [smem:[#allocation0]]
  $region38: #{tpu_custom_call.1} parent=0
    _
  %s10 = ssub.s32 1, %s8
  %s11 = scalar_select 0, %s10, %s8
  // Predicated region
  $region2: #{tpu_custom_call.1} parent=0 // pred_check
    _
  $region3: #{tpu_custom_call.1} parent=0 // pred_check_branch
    %13 = sbr.rel (0) target = $region5
  $region4: #{tpu_custom_call.1} parent=0 // pred_region
    _
  $region5: #{tpu_custom_call.1} parent=0 // pred_fallthru
    _
  // Predicated region
  $region6: #{tpu_custom_call.1} parent=0 // pred_check
    _
  $region7: #{tpu_custom_call.1} parent=0 // pred_check_branch
    %15 = sbr.rel (0) target = $region9
  $region8: #{tpu_custom_call.1} parent=0 // pred_region
    _
  $region9: #{tpu_custom_call.1} parent=0 // pred_fallthru
    _
  // Predicated region
  $region10: #{tpu_custom_call.1} parent=0 // pred_check
    _
  $region11: #{tpu_custom_call.1} parent=0 // pred_check_branch
    %17 = sbr.rel (0) target = $region13
  $region12: #{tpu_custom_call.1} parent=0 // pred_region
    _
  $region13: #{tpu_custom_call.1} parent=0 // pred_fallthru
    _
  // Predicated region
  $region14: #{tpu_custom_call.1} parent=0 // pred_check
    _
  $region15: #{tpu_custom_call.1} parent=0 // pred_check_branch
    %19 = sbr.rel (0) target = $region17
  $region16: #{tpu_custom_call.1} parent=0 // pred_region
    _
  $region17: #{tpu_custom_call.1} parent=0 // pred_fallthru
    _
  // Predicated region
  $region18: #{tpu_custom_call.1} parent=0 // pred_check
    _
  $region19: #{tpu_custom_call.1} parent=0 // pred_check_branch
    %21 = sbr.rel (0) target = $region21
  $region20: #{tpu_custom_call.1} parent=0 // pred_region
    _
  $region21: #{tpu_custom_call.1} parent=0 // pred_fallthru
    _
  // Predicated region
  $region22: #{tpu_custom_call.1} parent=0 // pred_check
    _
  $region23: #{tpu_custom_call.1} parent=0 // pred_check_branch
    %23 = sbr.rel (0) target = $region25
  $region24: #{tpu_custom_call.1} parent=0 // pred_region
    _
  $region25: #{tpu_custom_call.1} parent=0 // pred_fallthru
    _
  // Predicated region
  $region26: #{tpu_custom_call.1} parent=0 // pred_check
    _
  $region27: #{tpu_custom_call.1} parent=0 // pred_check_branch
    %25 = sbr.rel (0) target = $region29
  $region28: #{tpu_custom_call.1} parent=0 // pred_region
    _
  $region29: #{tpu_custom_call.1} parent=0 // pred_fallthru
    _
  %v26 = vld [vmem:[%s0] sm:$0xff]
  %v27 = vld [vmem:[%s0 + $0x8] sm:$0xff]
  %v28 = vld [vmem:[%s0 + $0x10] sm:$0xff]
  %v29 = vld [vmem:[%s0 + $0x18] sm:$0xff]
  %v30 = vld [vmem:[%s0 + $0x20] sm:$0xff]
  %v31 = vld [vmem:[%s0 + $0x28] sm:$0xff]
  %v32 = vld [vmem:[%s0 + $0x30] sm:$0xff]
  %v33 = vld [vmem:[%s0 + $0x38] sm:$0xff]
  %v34 = vld [vmem:[%s0 + $0x40] sm:$0xff]
  %v35 = vld [vmem:[%s0 + $0x48] sm:$0xff]
  %v36 = vld [vmem:[%s0 + $0x50] sm:$0xff]
  %v37 = vld [vmem:[%s0 + $0x58] sm:$0xff]
  %v38 = vld [vmem:[%s0 + $0x60] sm:$0xff]
  %v39 = vld [vmem:[%s0 + $0x68] sm:$0xff]
  %v40 = vld [vmem:[%s0 + $0x70] sm:$0xff]
  %v41 = vld [vmem:[%s0 + $0x78] sm:$0xff]
  %v42 = vld [vmem:[%s0 + $0x80] sm:$0xff]
  %v43 = vld [vmem:[%s0 + $0x88] sm:$0xff]
  %v44 = vld [vmem:[%s0 + $0x90] sm:$0xff]
  %v45 = vld [vmem:[%s0 + $0x98] sm:$0xff]
  %v46 = vld [vmem:[%s0 + $0xa0] sm:$0xff]
  %v47 = vld [vmem:[%s0 + $0xa8] sm:$0xff]
  %v48 = vld [vmem:[%s0 + $0xb0] sm:$0xff]
  %v49 = vld [vmem:[%s0 + $0xb8] sm:$0xff]
  %v50 = vld [vmem:[%s0 + $0xc0] sm:$0xff]
  %v51 = vld [vmem:[%s0 + $0xc8] sm:$0xff]
  %v52 = vld [vmem:[%s0 + $0xd0] sm:$0xff]
  %v53 = vld [vmem:[%s0 + $0xd8] sm:$0xff]
  %v54 = vld [vmem:[%s0 + $0xe0] sm:$0xff]
  %v55 = vld [vmem:[%s0 + $0xe8] sm:$0xff]
  %v56 = vld [vmem:[%s0 + $0xf0] sm:$0xff]
  %v57 = vld [vmem:[%s0 + $0xf8] sm:$0xff]
  %v58 = vld [vmem:[%s0 + $0x100] sm:$0xff]
  %v59 = vld [vmem:[%s0 + $0x108] sm:$0xff]
  %v60 = vld [vmem:[%s0 + $0x110] sm:$0xff]
  %v61 = vld [vmem:[%s0 + $0x118] sm:$0xff]
  %v62 = vld [vmem:[%s0 + $0x120] sm:$0xff]
  %v63 = vld [vmem:[%s0 + $0x128] sm:$0xff]
  %v64 = vld [vmem:[%s0 + $0x130] sm:$0xff]
  %v65 = vld [vmem:[%s0 + $0x138] sm:$0xff]
  %v66 = vld [vmem:[%s0 + $0x140] sm:$0xff]
  %v67 = vld [vmem:[%s0 + $0x148] sm:$0xff]
  %v68 = vld [vmem:[%s0 + $0x150] sm:$0xff]
  %v69 = vld [vmem:[%s0 + $0x158] sm:$0xff]
  %v70 = vld [vmem:[%s0 + $0x160] sm:$0xff]
  %v71 = vld [vmem:[%s0 + $0x168] sm:$0xff]
  %v72 = vld [vmem:[%s0 + $0x170] sm:$0xff]
  %v73 = vld [vmem:[%s0 + $0x178] sm:$0xff]
  %v74 = vld [vmem:[%s0 + $0x180] sm:$0xff]
  %v75 = vld [vmem:[%s0 + $0x188] sm:$0xff]
  %v76 = vld [vmem:[%s0 + $0x190] sm:$0xff]
  %v77 = vld [vmem:[%s0 + $0x198] sm:$0xff]
  %v78 = vld [vmem:[%s0 + $0x1a0] sm:$0xff]
  %v79 = vld [vmem:[%s0 + $0x1a8] sm:$0xff]
  %v80 = vld [vmem:[%s0 + $0x1b0] sm:$0xff]
  %v81 = vld [vmem:[%s0 + $0x1b8] sm:$0xff]
  %v82 = vld [vmem:[%s0 + $0x1c0] sm:$0xff]
  %v83 = vld [vmem:[%s0 + $0x1c8] sm:$0xff]
  %v84 = vld [vmem:[%s0 + $0x1d0] sm:$0xff]
  %v85 = vld [vmem:[%s0 + $0x1d8] sm:$0xff]
  %v86 = vld [vmem:[%s0 + $0x1e0] sm:$0xff]
  %v87 = vld [vmem:[%s0 + $0x1e8] sm:$0xff]
  %v88 = vld [vmem:[%s0 + $0x1f0] sm:$0xff]
  %v89 = vld [vmem:[%s0 + $0x1f8] sm:$0xff]
  %v90 = vld [vmem:[%s1] sm:$0xff]
  %v91 = vld [vmem:[%s1 + $0x8] sm:$0xff]
  %v92 = vld [vmem:[%s2] sm:$0x1]
  %v94 = vlaneseq
  %v95 = vshrl.u32 %v94, 7
  %v96 = vsub.s32 0, %v95
  %v97 = vrot.slane %v92, %v96
  %vm99 = vcmask 130048
  %v101 = vsel %vm99, %v26, 0
  %v104 = vsel %vm99, %v27, 0
  %v107 = vsel %vm99, %v28, 0
  %v110 = vsel %vm99, %v29, 0
  %v113 = vsel %vm99, %v30, 0
  %v116 = vsel %vm99, %v31, 0
  %v119 = vsel %vm99, %v32, 0
  %v122 = vsel %vm99, %v33, 0
  %v125 = vsel %vm99, %v34, 0
  %v128 = vsel %vm99, %v35, 0
  %v131 = vsel %vm99, %v36, 0
  %v134 = vsel %vm99, %v37, 0
  %v137 = vsel %vm99, %v38, 0
  %v140 = vsel %vm99, %v39, 0
  %v143 = vsel %vm99, %v40, 0
  %v146 = vsel %vm99, %v41, 0
  %v149 = vsel %vm99, %v42, 0
  %v152 = vsel %vm99, %v43, 0
  %v155 = vsel %vm99, %v44, 0
  %v158 = vsel %vm99, %v45, 0
  %v161 = vsel %vm99, %v46, 0
  %v164 = vsel %vm99, %v47, 0
  %v167 = vsel %vm99, %v48, 0
  %v170 = vsel %vm99, %v49, 0
  %v173 = vsel %vm99, %v50, 0
  %v176 = vsel %vm99, %v51, 0
  %v179 = vsel %vm99, %v52, 0
  %v182 = vsel %vm99, %v53, 0
  %v185 = vsel %vm99, %v54, 0
  %v188 = vsel %vm99, %v55, 0
  %v191 = vsel %vm99, %v56, 0
  %v194 = vsel %vm99, %v57, 0
  %v197 = vsel %vm99, %v58, 0
  %v200 = vsel %vm99, %v59, 0
  %v203 = vsel %vm99, %v60, 0
  %v206 = vsel %vm99, %v61, 0
  %v209 = vsel %vm99, %v62, 0
  %v212 = vsel %vm99, %v63, 0
  %v215 = vsel %vm99, %v64, 0
  %v218 = vsel %vm99, %v65, 0
  %v221 = vsel %vm99, %v66, 0
  %v224 = vsel %vm99, %v67, 0
  %v227 = vsel %vm99, %v68, 0
  %v230 = vsel %vm99, %v69, 0
  %v233 = vsel %vm99, %v70, 0
  %v236 = vsel %vm99, %v71, 0
  %v239 = vsel %vm99, %v72, 0
  %v242 = vsel %vm99, %v73, 0
  %v245 = vsel %vm99, %v74, 0
  %v248 = vsel %vm99, %v75, 0
  %v251 = vsel %vm99, %v76, 0
  %v254 = vsel %vm99, %v77, 0
  %v257 = vsel %vm99, %v78, 0
  %v260 = vsel %vm99, %v79, 0
  %v263 = vsel %vm99, %v80, 0
  %v266 = vsel %vm99, %v81, 0
  %v269 = vsel %vm99, %v82, 0
  %v272 = vsel %vm99, %v83, 0
  %v275 = vsel %vm99, %v84, 0
  %v278 = vsel %vm99, %v85, 0
  %v281 = vsel %vm99, %v86, 0
  %v284 = vsel %vm99, %v87, 0
  %v287 = vsel %vm99, %v88, 0
  %v290 = vsel %vm99, %v89, 0
  %292 = vmatprep.subr.mxu0 0.0
  %293 = vmatpush1.msra.mxu0 0.0
  %294 = vmatprep.subr.mxu0 0.0
  %295 = vmatpush1.msra.mxu0 0.0
  %296 = vmatprep.subr.mxu0 0.0
  %297 = vmatpush1.msra.mxu0 0.0
  %298 = vmatprep.subr.mxu0 0.0
  %299 = vmatpush1.msra.mxu0 0.0
  %300 = vmatprep.subr.mxu0 0.0
  %301 = vmatpush1.msra.mxu0 0.0
  %302 = vmatprep.subr.mxu0 0.0
  %303 = vmatpush1.msra.mxu0 0.0
  %304 = vmatprep.subr.mxu0 0.0
  %305 = vmatpush1.msra.mxu0 0.0
  %306 = vmatprep.subr.mxu0 0.0
  %307 = vmatpush1.msra.mxu0 0.0
  %308 = vmatprep.subr.mxu0 0.0
  %309 = vmatpush1.msra.mxu0 0.0
  %310 = vmatprep.subr.mxu0 0.0
  %311 = vmatpush1.msra.mxu0 0.0
  %312 = vmatprep.subr.mxu0 0.0
  %313 = vmatpush1.msra.mxu0 0.0
  %314 = vmatprep.subr.mxu0 0.0
  %315 = vmatpush1.msra.mxu0 0.0
  %316 = vmatprep.subr.mxu0 0.0
  %317 = vmatpush1.msra.mxu0 0.0
  %318 = vmatprep.subr.mxu0 0.0
  %319 = vmatpush1.msra.mxu0 0.0
  %320 = vmatprep.subr.mxu0 0.0
  %321 = vmatpush1.msra.mxu0 %v91
  %322 = vmatprep.subr.mxu0 0.0
  %323 = vmatpush1.msra.mxu0 %v90
  %324 = vmatprep.subr.mxu0 0.0
  %325 = vmatpush2.msra.mxu0 0.0
  %326 = vmatprep.subr.mxu0 0.0
  %327 = vmatpush2.msra.mxu0 0.0
  %328 = vmatprep.subr.mxu0 0.0
  %329 = vmatpush2.msra.mxu0 0.0
  %330 = vmatprep.subr.mxu0 0.0
  %331 = vmatpush2.msra.mxu0 0.0
  %332 = vmatprep.subr.mxu0 0.0
  %333 = vmatpush2.msra.mxu0 0.0
  %334 = vmatprep.subr.mxu0 0.0
  %335 = vmatpush2.msra.mxu0 0.0
  %336 = vmatprep.subr.mxu0 0.0
  %337 = vmatpush2.msra.mxu0 0.0
  %338 = vmatprep.subr.mxu0 0.0
  %339 = vmatpush2.msra.mxu0 0.0
  %340 = vmatprep.subr.mxu0 0.0
  %341 = vmatpush2.msra.mxu0 0.0
  %342 = vmatprep.subr.mxu0 0.0
  %343 = vmatpush2.msra.mxu0 0.0
  %344 = vmatprep.subr.mxu0 0.0
  %345 = vmatpush2.msra.mxu0 0.0
  %346 = vmatprep.subr.mxu0 0.0
  %347 = vmatpush2.msra.mxu0 0.0
  %348 = vmatprep.subr.mxu0 0.0
  %349 = vmatpush2.msra.mxu0 0.0
  %350 = vmatprep.subr.mxu0 0.0
  %351 = vmatpush2.msra.mxu0 0.0
  %352 = vmatprep.subr.mxu0 0.0
  %353 = vmatpush2.msra.mxu0 0.0
  %354 = vmatprep.subr.mxu0 0.0
  %355 = vmatpush2.msra.mxu0 0.0
  %356 = vmatprep.mubr.f32.mxu0 0.0
  %357 = vmatmul.mubr.f32.gmra.mxu0 %v101
  %v358 = vpop.f32.mrf.mxu0
  %v359 = vadd.f32 %v97, %v358
  %v360 = vpop.f32.mrf.mxu0
  %361 = vmatprep.mubr.f32.mxu0 0.0
  %362 = vmatmul.mubr.f32.gmra.mxu0 %v104
  %v363 = vpop.f32.mrf.mxu0
  %v364 = vadd.f32 %v97, %v363
  %v365 = vpop.f32.mrf.mxu0
  %366 = vmatprep.mubr.f32.mxu0 0.0
  %367 = vmatmul.mubr.f32.gmra.mxu0 %v107
  %v368 = vpop.f32.mrf.mxu0
  %v369 = vadd.f32 %v97, %v368
  %v370 = vpop.f32.mrf.mxu0
  %371 = vmatprep.mubr.f32.mxu0 0.0
  %372 = vmatmul.mubr.f32.gmra.mxu0 %v110
  %v373 = vpop.f32.mrf.mxu0
  %v374 = vadd.f32 %v97, %v373
  %v375 = vpop.f32.mrf.mxu0
  %376 = vmatprep.mubr.f32.mxu0 0.0
  %377 = vmatmul.mubr.f32.gmra.mxu0 %v113
  %v378 = vpop.f32.mrf.mxu0
  %v379 = vadd.f32 %v97, %v378
  %v380 = vpop.f32.mrf.mxu0
  %381 = vmatprep.mubr.f32.mxu0 0.0
  %382 = vmatmul.mubr.f32.gmra.mxu0 %v116
  %v383 = vpop.f32.mrf.mxu0
  %v384 = vadd.f32 %v97, %v383
  %v385 = vpop.f32.mrf.mxu0
  %386 = vmatprep.mubr.f32.mxu0 0.0
  %387 = vmatmul.mubr.f32.gmra.mxu0 %v119
  %v388 = vpop.f32.mrf.mxu0
  %v389 = vadd.f32 %v97, %v388
  %v390 = vpop.f32.mrf.mxu0
  %391 = vmatprep.mubr.f32.mxu0 0.0
  %392 = vmatmul.mubr.f32.gmra.mxu0 %v122
  %v393 = vpop.f32.mrf.mxu0
  %v394 = vadd.f32 %v97, %v393
  %v395 = vpop.f32.mrf.mxu0
  %396 = vmatprep.mubr.f32.mxu0 0.0
  %397 = vmatmul.mubr.f32.gmra.mxu0 %v125
  %v398 = vpop.f32.mrf.mxu0
  %v399 = vadd.f32 %v97, %v398
  %v400 = vpop.f32.mrf.mxu0
  %401 = vmatprep.mubr.f32.mxu0 0.0
  %402 = vmatmul.mubr.f32.gmra.mxu0 %v128
  %v403 = vpop.f32.mrf.mxu0
  %v404 = vadd.f32 %v97, %v403
  %v405 = vpop.f32.mrf.mxu0
  %406 = vmatprep.mubr.f32.mxu0 0.0
  %407 = vmatmul.mubr.f32.gmra.mxu0 %v131
  %v408 = vpop.f32.mrf.mxu0
  %v409 = vadd.f32 %v97, %v408
  %v410 = vpop.f32.mrf.mxu0
  %411 = vmatprep.mubr.f32.mxu0 0.0
  %412 = vmatmul.mubr.f32.gmra.mxu0 %v134
  %v413 = vpop.f32.mrf.mxu0
  %v414 = vadd.f32 %v97, %v413
  %v415 = vpop.f32.mrf.mxu0
  %416 = vmatprep.mubr.f32.mxu0 0.0
  %417 = vmatmul.mubr.f32.gmra.mxu0 %v137
  %v418 = vpop.f32.mrf.mxu0
  %v419 = vadd.f32 %v97, %v418
  %v420 = vpop.f32.mrf.mxu0
  %421 = vmatprep.mubr.f32.mxu0 0.0
  %422 = vmatmul.mubr.f32.gmra.mxu0 %v140
  %v423 = vpop.f32.mrf.mxu0
  %v424 = vadd.f32 %v97, %v423
  %v425 = vpop.f32.mrf.mxu0
  %426 = vmatprep.mubr.f32.mxu0 0.0
  %427 = vmatmul.mubr.f32.gmra.mxu0 %v143
  %v428 = vpop.f32.mrf.mxu0
  %v429 = vadd.f32 %v97, %v428
  %v430 = vpop.f32.mrf.mxu0
  %431 = vmatprep.mubr.f32.mxu0 0.0
  %432 = vmatmul.mubr.f32.gmra.mxu0 %v146
  %v433 = vpop.f32.mrf.mxu0
  %v434 = vadd.f32 %v97, %v433
  %v435 = vpop.f32.mrf.mxu0
  %436 = vmatprep.mubr.f32.mxu0 0.0
  %437 = vmatmul.mubr.f32.gmra.mxu0 %v149
  %v438 = vpop.f32.mrf.mxu0
  %v439 = vadd.f32 %v97, %v438
  %v440 = vpop.f32.mrf.mxu0
  %441 = vmatprep.mubr.f32.mxu0 0.0
  %442 = vmatmul.mubr.f32.gmra.mxu0 %v152
  %v443 = vpop.f32.mrf.mxu0
  %v444 = vadd.f32 %v97, %v443
  %v445 = vpop.f32.mrf.mxu0
  %446 = vmatprep.mubr.f32.mxu0 0.0
  %447 = vmatmul.mubr.f32.gmra.mxu0 %v155
  %v448 = vpop.f32.mrf.mxu0
  %v449 = vadd.f32 %v97, %v448
  %v450 = vpop.f32.mrf.mxu0
  %451 = vmatprep.mubr.f32.mxu0 0.0
  %452 = vmatmul.mubr.f32.gmra.mxu0 %v158
  %v453 = vpop.f32.mrf.mxu0
  %v454 = vadd.f32 %v97, %v453
  %v455 = vpop.f32.mrf.mxu0
  %456 = vmatprep.mubr.f32.mxu0 0.0
  %457 = vmatmul.mubr.f32.gmra.mxu0 %v161
  %v458 = vpop.f32.mrf.mxu0
  %v459 = vadd.f32 %v97, %v458
  %v460 = vpop.f32.mrf.mxu0
  %461 = vmatprep.mubr.f32.mxu0 0.0
  %462 = vmatmul.mubr.f32.gmra.mxu0 %v164
  %v463 = vpop.f32.mrf.mxu0
  %v464 = vadd.f32 %v97, %v463
  %v465 = vpop.f32.mrf.mxu0
  %466 = vmatprep.mubr.f32.mxu0 0.0
  %467 = vmatmul.mubr.f32.gmra.mxu0 %v167
  %v468 = vpop.f32.mrf.mxu0
  %v469 = vadd.f32 %v97, %v468
  %v470 = vpop.f32.mrf.mxu0
  %471 = vmatprep.mubr.f32.mxu0 0.0
  %472 = vmatmul.mubr.f32.gmra.mxu0 %v170
  %v473 = vpop.f32.mrf.mxu0
  %v474 = vadd.f32 %v97, %v473
  %v475 = vpop.f32.mrf.mxu0
  %476 = vmatprep.mubr.f32.mxu0 0.0
  %477 = vmatmul.mubr.f32.gmra.mxu0 %v173
  %v478 = vpop.f32.mrf.mxu0
  %v479 = vadd.f32 %v97, %v478
  %v480 = vpop.f32.mrf.mxu0
  %481 = vmatprep.mubr.f32.mxu0 0.0
  %482 = vmatmul.mubr.f32.gmra.mxu0 %v176
  %v483 = vpop.f32.mrf.mxu0
  %v484 = vadd.f32 %v97, %v483
  %v485 = vpop.f32.mrf.mxu0
  %486 = vmatprep.mubr.f32.mxu0 0.0
  %487 = vmatmul.mubr.f32.gmra.mxu0 %v179
  %v488 = vpop.f32.mrf.mxu0
  %v489 = vadd.f32 %v97, %v488
  %v490 = vpop.f32.mrf.mxu0
  %491 = vmatprep.mubr.f32.mxu0 0.0
  %492 = vmatmul.mubr.f32.gmra.mxu0 %v182
  %v493 = vpop.f32.mrf.mxu0
  %v494 = vadd.f32 %v97, %v493
  %v495 = vpop.f32.mrf.mxu0
  %496 = vmatprep.mubr.f32.mxu0 0.0
  %497 = vmatmul.mubr.f32.gmra.mxu0 %v185
  %v498 = vpop.f32.mrf.mxu0
  %v499 = vadd.f32 %v97, %v498
  %v500 = vpop.f32.mrf.mxu0
  %501 = vmatprep.mubr.f32.mxu0 0.0
  %502 = vmatmul.mubr.f32.gmra.mxu0 %v188
  %v503 = vpop.f32.mrf.mxu0
  %v504 = vadd.f32 %v97, %v503
  %v505 = vpop.f32.mrf.mxu0
  %506 = vmatprep.mubr.f32.mxu0 0.0
  %507 = vmatmul.mubr.f32.gmra.mxu0 %v191
  %v508 = vpop.f32.mrf.mxu0
  %v509 = vadd.f32 %v97, %v508
  %v510 = vpop.f32.mrf.mxu0
  %511 = vmatprep.mubr.f32.mxu0 0.0
  %512 = vmatmul.mubr.f32.gmra.mxu0 %v194
  %v513 = vpop.f32.mrf.mxu0
  %v514 = vadd.f32 %v97, %v513
  %v515 = vpop.f32.mrf.mxu0
  %516 = vmatprep.mubr.f32.mxu0 0.0
  %517 = vmatmul.mubr.f32.gmra.mxu0 %v197
  %v518 = vpop.f32.mrf.mxu0
  %v519 = vadd.f32 %v97, %v518
  %v520 = vpop.f32.mrf.mxu0
  %521 = vmatprep.mubr.f32.mxu0 0.0
  %522 = vmatmul.mubr.f32.gmra.mxu0 %v200
  %v523 = vpop.f32.mrf.mxu0
  %v524 = vadd.f32 %v97, %v523
  %v525 = vpop.f32.mrf.mxu0
  %526 = vmatprep.mubr.f32.mxu0 0.0
  %527 = vmatmul.mubr.f32.gmra.mxu0 %v203
  %v528 = vpop.f32.mrf.mxu0
  %v529 = vadd.f32 %v97, %v528
  %v530 = vpop.f32.mrf.mxu0
  %531 = vmatprep.mubr.f32.mxu0 0.0
  %532 = vmatmul.mubr.f32.gmra.mxu0 %v206
  %v533 = vpop.f32.mrf.mxu0
  %v534 = vadd.f32 %v97, %v533
  %v535 = vpop.f32.mrf.mxu0
  %536 = vmatprep.mubr.f32.mxu0 0.0
  %537 = vmatmul.mubr.f32.gmra.mxu0 %v209
  %v538 = vpop.f32.mrf.mxu0
  %v539 = vadd.f32 %v97, %v538
  %v540 = vpop.f32.mrf.mxu0
  %541 = vmatprep.mubr.f32.mxu0 0.0
  %542 = vmatmul.mubr.f32.gmra.mxu0 %v212
  %v543 = vpop.f32.mrf.mxu0
  %v544 = vadd.f32 %v97, %v543
  %v545 = vpop.f32.mrf.mxu0
  %546 = vmatprep.mubr.f32.mxu0 0.0
  %547 = vmatmul.mubr.f32.gmra.mxu0 %v215
  %v548 = vpop.f32.mrf.mxu0
  %v549 = vadd.f32 %v97, %v548
  %v550 = vpop.f32.mrf.mxu0
  %551 = vmatprep.mubr.f32.mxu0 0.0
  %552 = vmatmul.mubr.f32.gmra.mxu0 %v218
  %v553 = vpop.f32.mrf.mxu0
  %v554 = vadd.f32 %v97, %v553
  %v555 = vpop.f32.mrf.mxu0
  %556 = vmatprep.mubr.f32.mxu0 0.0
  %557 = vmatmul.mubr.f32.gmra.mxu0 %v221
  %v558 = vpop.f32.mrf.mxu0
  %v559 = vadd.f32 %v97, %v558
  %v560 = vpop.f32.mrf.mxu0
  %561 = vmatprep.mubr.f32.mxu0 0.0
  %562 = vmatmul.mubr.f32.gmra.mxu0 %v224
  %v563 = vpop.f32.mrf.mxu0
  %v564 = vadd.f32 %v97, %v563
  %v565 = vpop.f32.mrf.mxu0
  %566 = vmatprep.mubr.f32.mxu0 0.0
  %567 = vmatmul.mubr.f32.gmra.mxu0 %v227
  %v568 = vpop.f32.mrf.mxu0
  %v569 = vadd.f32 %v97, %v568
  %v570 = vpop.f32.mrf.mxu0
  %571 = vmatprep.mubr.f32.mxu0 0.0
  %572 = vmatmul.mubr.f32.gmra.mxu0 %v230
  %v573 = vpop.f32.mrf.mxu0
  %v574 = vadd.f32 %v97, %v573
  %v575 = vpop.f32.mrf.mxu0
  %576 = vmatprep.mubr.f32.mxu0 0.0
  %577 = vmatmul.mubr.f32.gmra.mxu0 %v233
  %v578 = vpop.f32.mrf.mxu0
  %v579 = vadd.f32 %v97, %v578
  %v580 = vpop.f32.mrf.mxu0
  %581 = vmatprep.mubr.f32.mxu0 0.0
  %582 = vmatmul.mubr.f32.gmra.mxu0 %v236
  %v583 = vpop.f32.mrf.mxu0
  %v584 = vadd.f32 %v97, %v583
  %v585 = vpop.f32.mrf.mxu0
  %586 = vmatprep.mubr.f32.mxu0 0.0
  %587 = vmatmul.mubr.f32.gmra.mxu0 %v239
  %v588 = vpop.f32.mrf.mxu0
  %v589 = vadd.f32 %v97, %v588
  %v590 = vpop.f32.mrf.mxu0
  %591 = vmatprep.mubr.f32.mxu0 0.0
  %592 = vmatmul.mubr.f32.gmra.mxu0 %v242
  %v593 = vpop.f32.mrf.mxu0
  %v594 = vadd.f32 %v97, %v593
  %v595 = vpop.f32.mrf.mxu0
  %596 = vmatprep.mubr.f32.mxu0 0.0
  %597 = vmatmul.mubr.f32.gmra.mxu0 %v245
  %v598 = vpop.f32.mrf.mxu0
  %v599 = vadd.f32 %v97, %v598
  %v600 = vpop.f32.mrf.mxu0
  %601 = vmatprep.mubr.f32.mxu0 0.0
  %602 = vmatmul.mubr.f32.gmra.mxu0 %v248
  %v603 = vpop.f32.mrf.mxu0
  %v604 = vadd.f32 %v97, %v603
  %v605 = vpop.f32.mrf.mxu0
  %606 = vmatprep.mubr.f32.mxu0 0.0
  %607 = vmatmul.mubr.f32.gmra.mxu0 %v251
  %v608 = vpop.f32.mrf.mxu0
  %v609 = vadd.f32 %v97, %v608
  %v610 = vpop.f32.mrf.mxu0
  %611 = vmatprep.mubr.f32.mxu0 0.0
  %612 = vmatmul.mubr.f32.gmra.mxu0 %v254
  %v613 = vpop.f32.mrf.mxu0
  %v614 = vadd.f32 %v97, %v613
  %v615 = vpop.f32.mrf.mxu0
  %616 = vmatprep.mubr.f32.mxu0 0.0
  %617 = vmatmul.mubr.f32.gmra.mxu0 %v257
  %v618 = vpop.f32.mrf.mxu0
  %v619 = vadd.f32 %v97, %v618
  %v620 = vpop.f32.mrf.mxu0
  %621 = vmatprep.mubr.f32.mxu0 0.0
  %622 = vmatmul.mubr.f32.gmra.mxu0 %v260
  %v623 = vpop.f32.mrf.mxu0
  %v624 = vadd.f32 %v97, %v623
  %v625 = vpop.f32.mrf.mxu0
  %626 = vmatprep.mubr.f32.mxu0 0.0
  %627 = vmatmul.mubr.f32.gmra.mxu0 %v263
  %v628 = vpop.f32.mrf.mxu0
  %v629 = vadd.f32 %v97, %v628
  %v630 = vpop.f32.mrf.mxu0
  %631 = vmatprep.mubr.f32.mxu0 0.0
  %632 = vmatmul.mubr.f32.gmra.mxu0 %v266
  %v633 = vpop.f32.mrf.mxu0
  %v634 = vadd.f32 %v97, %v633
  %v635 = vpop.f32.mrf.mxu0
  %636 = vmatprep.mubr.f32.mxu0 0.0
  %637 = vmatmul.mubr.f32.gmra.mxu0 %v269
  %v638 = vpop.f32.mrf.mxu0
  %v639 = vadd.f32 %v97, %v638
  %v640 = vpop.f32.mrf.mxu0
  %641 = vmatprep.mubr.f32.mxu0 0.0
  %642 = vmatmul.mubr.f32.gmra.mxu0 %v272
  %v643 = vpop.f32.mrf.mxu0
  %v644 = vadd.f32 %v97, %v643
  %v645 = vpop.f32.mrf.mxu0
  %646 = vmatprep.mubr.f32.mxu0 0.0
  %647 = vmatmul.mubr.f32.gmra.mxu0 %v275
  %v648 = vpop.f32.mrf.mxu0
  %v649 = vadd.f32 %v97, %v648
  %v650 = vpop.f32.mrf.mxu0
  %651 = vmatprep.mubr.f32.mxu0 0.0
  %652 = vmatmul.mubr.f32.gmra.mxu0 %v278
  %v653 = vpop.f32.mrf.mxu0
  %v654 = vadd.f32 %v97, %v653
  %v655 = vpop.f32.mrf.mxu0
  %656 = vmatprep.mubr.f32.mxu0 0.0
  %657 = vmatmul.mubr.f32.gmra.mxu0 %v281
  %v658 = vpop.f32.mrf.mxu0
  %v659 = vadd.f32 %v97, %v658
  %v660 = vpop.f32.mrf.mxu0
  %661 = vmatprep.mubr.f32.mxu0 0.0
  %662 = vmatmul.mubr.f32.gmra.mxu0 %v284
  %v663 = vpop.f32.mrf.mxu0
  %v664 = vadd.f32 %v97, %v663
  %v665 = vpop.f32.mrf.mxu0
  %666 = vmatprep.mubr.f32.mxu0 0.0
  %667 = vmatmul.mubr.f32.gmra.mxu0 %v287
  %v668 = vpop.f32.mrf.mxu0
  %v669 = vadd.f32 %v97, %v668
  %v670 = vpop.f32.mrf.mxu0
  %671 = vmatprep.mubr.f32.mxu0 0.0
  %672 = vmatmul.mubr.f32.gmra.mxu0 %v290
  %v673 = vpop.f32.mrf.mxu0
  %v674 = vadd.f32 %v97, %v673
  %v675 = vpop.f32.mrf.mxu0
  %676 = vdwg.mxu0
  %v677 = vmax.f32 %v359, 0.0
  %v678 = vmax.f32 %v364, 0.0
  %v679 = vmax.f32 %v369, 0.0
  %v680 = vmax.f32 %v374, 0.0
  %v681 = vmax.f32 %v379, 0.0
  %v682 = vmax.f32 %v384, 0.0
  %v683 = vmax.f32 %v389, 0.0
  %v684 = vmax.f32 %v394, 0.0
  %v685 = vmax.f32 %v399, 0.0
  %v686 = vmax.f32 %v404, 0.0
  %v687 = vmax.f32 %v409, 0.0
  %v688 = vmax.f32 %v414, 0.0
  %v689 = vmax.f32 %v419, 0.0
  %v690 = vmax.f32 %v424, 0.0
  %v691 = vmax.f32 %v429, 0.0
  %v692 = vmax.f32 %v434, 0.0
  %v693 = vmax.f32 %v439, 0.0
  %v694 = vmax.f32 %v444, 0.0
  %v695 = vmax.f32 %v449, 0.0
  %v696 = vmax.f32 %v454, 0.0
  %v697 = vmax.f32 %v459, 0.0
  %v698 = vmax.f32 %v464, 0.0
  %v699 = vmax.f32 %v469, 0.0
  %v700 = vmax.f32 %v474, 0.0
  %v701 = vmax.f32 %v479, 0.0
  %v702 = vmax.f32 %v484, 0.0
  %v703 = vmax.f32 %v489, 0.0
  %v704 = vmax.f32 %v494, 0.0
  %v705 = vmax.f32 %v499, 0.0
  %v706 = vmax.f32 %v504, 0.0
  %v707 = vmax.f32 %v509, 0.0
  %v708 = vmax.f32 %v514, 0.0
  %v709 = vmax.f32 %v519, 0.0
  %v710 = vmax.f32 %v524, 0.0
  %v711 = vmax.f32 %v529, 0.0
  %v712 = vmax.f32 %v534, 0.0
  %v713 = vmax.f32 %v539, 0.0
  %v714 = vmax.f32 %v544, 0.0
  %v715 = vmax.f32 %v549, 0.0
  %v716 = vmax.f32 %v554, 0.0
  %v717 = vmax.f32 %v559, 0.0
  %v718 = vmax.f32 %v564, 0.0
  %v719 = vmax.f32 %v569, 0.0
  %v720 = vmax.f32 %v574, 0.0
  %v721 = vmax.f32 %v579, 0.0
  %v722 = vmax.f32 %v584, 0.0
  %v723 = vmax.f32 %v589, 0.0
  %v724 = vmax.f32 %v594, 0.0
  %v725 = vmax.f32 %v599, 0.0
  %v726 = vmax.f32 %v604, 0.0
  %v727 = vmax.f32 %v609, 0.0
  %v728 = vmax.f32 %v614, 0.0
  %v729 = vmax.f32 %v619, 0.0
  %v730 = vmax.f32 %v624, 0.0
  %v731 = vmax.f32 %v629, 0.0
  %v732 = vmax.f32 %v634, 0.0
  %v733 = vmax.f32 %v639, 0.0
  %v734 = vmax.f32 %v644, 0.0
  %v735 = vmax.f32 %v649, 0.0
  %v736 = vmax.f32 %v654, 0.0
  %v737 = vmax.f32 %v659, 0.0
  %v738 = vmax.f32 %v664, 0.0
  %v739 = vmax.f32 %v669, 0.0
  %v740 = vmax.f32 %v674, 0.0
  %v741 = vld [vmem:[%s3] sm:$0xff]
  %v742 = vld [vmem:[%s3 + $0x8] sm:$0xff]
  %v743 = vld [vmem:[%s3 + $0x10] sm:$0xff]
  %v744 = vld [vmem:[%s3 + $0x18] sm:$0xff]
  %v745 = vld [vmem:[%s3 + $0x20] sm:$0xff]
  %v746 = vld [vmem:[%s3 + $0x28] sm:$0xff]
  %v747 = vld [vmem:[%s3 + $0x30] sm:$0xff]
  %v748 = vld [vmem:[%s3 + $0x38] sm:$0xff]
  %v749 = vld [vmem:[%s4] sm:$0x1]
  %v751 = vlaneseq
  %v752 = vshrl.u32 %v751, 7
  %v753 = vsub.s32 0, %v752
  %v754 = vrot.slane %v749, %v753
  %vm756 = vcmask 523264
  %v758 = vsel %vm756, %v677, 0
  %v761 = vsel %vm756, %v678, 0
  %v764 = vsel %vm756, %v679, 0
  %v767 = vsel %vm756, %v680, 0
  %v770 = vsel %vm756, %v681, 0
  %v773 = vsel %vm756, %v682, 0
  %v776 = vsel %vm756, %v683, 0
  %v779 = vsel %vm756, %v684, 0
  %v782 = vsel %vm756, %v685, 0
  %v785 = vsel %vm756, %v686, 0
  %v788 = vsel %vm756, %v687, 0
  %v791 = vsel %vm756, %v688, 0
  %v794 = vsel %vm756, %v689, 0
  %v797 = vsel %vm756, %v690, 0
  %v800 = vsel %vm756, %v691, 0
  %v803 = vsel %vm756, %v692, 0
  %v806 = vsel %vm756, %v693, 0
  %v809 = vsel %vm756, %v694, 0
  %v812 = vsel %vm756, %v695, 0
  %v815 = vsel %vm756, %v696, 0
  %v818 = vsel %vm756, %v697, 0
  %v821 = vsel %vm756, %v698, 0
  %v824 = vsel %vm756, %v699, 0
  %v827 = vsel %vm756, %v700, 0
  %v830 = vsel %vm756, %v701, 0
  %v833 = vsel %vm756, %v702, 0
  %v836 = vsel %vm756, %v703, 0
  %v839 = vsel %vm756, %v704, 0
  %v842 = vsel %vm756, %v705, 0
  %v845 = vsel %vm756, %v706, 0
  %v848 = vsel %vm756, %v707, 0
  %v851 = vsel %vm756, %v708, 0
  %v854 = vsel %vm756, %v709, 0
  %v857 = vsel %vm756, %v710, 0
  %v860 = vsel %vm756, %v711, 0
  %v863 = vsel %vm756, %v712, 0
  %v866 = vsel %vm756, %v713, 0
  %v869 = vsel %vm756, %v714, 0
  %v872 = vsel %vm756, %v715, 0
  %v875 = vsel %vm756, %v716, 0
  %v878 = vsel %vm756, %v717, 0
  %v881 = vsel %vm756, %v718, 0
  %v884 = vsel %vm756, %v719, 0
  %v887 = vsel %vm756, %v720, 0
  %v890 = vsel %vm756, %v721, 0
  %v893 = vsel %vm756, %v722, 0
  %v896 = vsel %vm756, %v723, 0
  %v899 = vsel %vm756, %v724, 0
  %v902 = vsel %vm756, %v725, 0
  %v905 = vsel %vm756, %v726, 0
  %v908 = vsel %vm756, %v727, 0
  %v911 = vsel %vm756, %v728, 0
  %v914 = vsel %vm756, %v729, 0
  %v917 = vsel %vm756, %v730, 0
  %v920 = vsel %vm756, %v731, 0
  %v923 = vsel %vm756, %v732, 0
  %v926 = vsel %vm756, %v733, 0
  %v929 = vsel %vm756, %v734, 0
  %v932 = vsel %vm756, %v735, 0
  %v935 = vsel %vm756, %v736, 0
  %v938 = vsel %vm756, %v737, 0
  %v941 = vsel %vm756, %v738, 0
  %v944 = vsel %vm756, %v739, 0
  %v947 = vsel %vm756, %v740, 0
  %949 = vmatprep.subr.mxu0 0.0
  %950 = vmatpush1.msra.mxu0 0.0
  %951 = vmatprep.subr.mxu0 0.0
  %952 = vmatpush1.msra.mxu0 0.0
  %953 = vmatprep.subr.mxu0 0.0
  %954 = vmatpush1.msra.mxu0 0.0
  %955 = vmatprep.subr.mxu0 0.0
  %956 = vmatpush1.msra.mxu0 0.0
  %957 = vmatprep.subr.mxu0 0.0
  %958 = vmatpush1.msra.mxu0 0.0
  %959 = vmatprep.subr.mxu0 0.0
  %960 = vmatpush1.msra.mxu0 0.0
  %961 = vmatprep.subr.mxu0 0.0
  %962 = vmatpush1.msra.mxu0 0.0
  %963 = vmatprep.subr.mxu0 0.0
  %964 = vmatpush1.msra.mxu0 0.0
  %965 = vmatprep.subr.mxu0 0.0
  %966 = vmatpush1.msra.mxu0 %v748
  %967 = vmatprep.subr.mxu0 0.0
  %968 = vmatpush1.msra.mxu0 %v747
  %969 = vmatprep.subr.mxu0 0.0
  %970 = vmatpush1.msra.mxu0 %v746
  %971 = vmatprep.subr.mxu0 0.0
  %972 = vmatpush1.msra.mxu0 %v745
  %973 = vmatprep.subr.mxu0 0.0
  %974 = vmatpush1.msra.mxu0 %v744
  %975 = vmatprep.subr.mxu0 0.0
  %976 = vmatpush1.msra.mxu0 %v743
  %977 = vmatprep.subr.mxu0 0.0
  %978 = vmatpush1.msra.mxu0 %v742
  %979 = vmatprep.subr.mxu0 0.0
  %980 = vmatpush1.msra.mxu0 %v741
  %981 = vmatprep.subr.mxu0 0.0
  %982 = vmatpush2.msra.mxu0 0.0
  %983 = vmatprep.subr.mxu0 0.0
  %984 = vmatpush2.msra.mxu0 0.0
  %985 = vmatprep.subr.mxu0 0.0
  %986 = vmatpush2.msra.mxu0 0.0
  %987 = vmatprep.subr.mxu0 0.0
  %988 = vmatpush2.msra.mxu0 0.0
  %989 = vmatprep.subr.mxu0 0.0
  %990 = vmatpush2.msra.mxu0 0.0
  %991 = vmatprep.subr.mxu0 0.0
  %992 = vmatpush2.msra.mxu0 0.0
  %993 = vmatprep.subr.mxu0 0.0
  %994 = vmatpush2.msra.mxu0 0.0
  %995 = vmatprep.subr.mxu0 0.0
  %996 = vmatpush2.msra.mxu0 0.0
  %997 = vmatprep.subr.mxu0 0.0
  %998 = vmatpush2.msra.mxu0 0.0
  %999 = vmatprep.subr.mxu0 0.0
  %1000 = vmatpush2.msra.mxu0 0.0
  %1001 = vmatprep.subr.mxu0 0.0
  %1002 = vmatpush2.msra.mxu0 0.0
  %1003 = vmatprep.subr.mxu0 0.0
  %1004 = vmatpush2.msra.mxu0 0.0
  %1005 = vmatprep.subr.mxu0 0.0
  %1006 = vmatpush2.msra.mxu0 0.0
  %1007 = vmatprep.subr.mxu0 0.0
  %1008 = vmatpush2.msra.mxu0 0.0
  %1009 = vmatprep.subr.mxu0 0.0
  %1010 = vmatpush2.msra.mxu0 0.0
  %1011 = vmatprep.subr.mxu0 0.0
  %1012 = vmatpush2.msra.mxu0 0.0
  %1013 = vmatprep.mubr.f32.mxu0 0.0
  %1014 = vmatmul.mubr.f32.gmra.mxu0 %v758
  %v1015 = vpop.f32.mrf.mxu0
  %v1016 = vadd.f32 %v754, %v1015
  %v1017 = vpop.f32.mrf.mxu0
  %1018 = vmatprep.mubr.f32.mxu0 0.0
  %1019 = vmatmul.mubr.f32.gmra.mxu0 %v761
  %v1020 = vpop.f32.mrf.mxu0
  %v1021 = vadd.f32 %v754, %v1020
  %v1022 = vpop.f32.mrf.mxu0
  %1023 = vmatprep.mubr.f32.mxu0 0.0
  %1024 = vmatmul.mubr.f32.gmra.mxu0 %v764
  %v1025 = vpop.f32.mrf.mxu0
  %v1026 = vadd.f32 %v754, %v1025
  %v1027 = vpop.f32.mrf.mxu0
  %1028 = vmatprep.mubr.f32.mxu0 0.0
  %1029 = vmatmul.mubr.f32.gmra.mxu0 %v767
  %v1030 = vpop.f32.mrf.mxu0
  %v1031 = vadd.f32 %v754, %v1030
  %v1032 = vpop.f32.mrf.mxu0
  %1033 = vmatprep.mubr.f32.mxu0 0.0
  %1034 = vmatmul.mubr.f32.gmra.mxu0 %v770
  %v1035 = vpop.f32.mrf.mxu0
  %v1036 = vadd.f32 %v754, %v1035
  %v1037 = vpop.f32.mrf.mxu0
  %1038 = vmatprep.mubr.f32.mxu0 0.0
  %1039 = vmatmul.mubr.f32.gmra.mxu0 %v773
  %v1040 = vpop.f32.mrf.mxu0
  %v1041 = vadd.f32 %v754, %v1040
  %v1042 = vpop.f32.mrf.mxu0
  %1043 = vmatprep.mubr.f32.mxu0 0.0
  %1044 = vmatmul.mubr.f32.gmra.mxu0 %v776
  %v1045 = vpop.f32.mrf.mxu0
  %v1046 = vadd.f32 %v754, %v1045
  %v1047 = vpop.f32.mrf.mxu0
  %1048 = vmatprep.mubr.f32.mxu0 0.0
  %1049 = vmatmul.mubr.f32.gmra.mxu0 %v779
  %v1050 = vpop.f32.mrf.mxu0
  %v1051 = vadd.f32 %v754, %v1050
  %v1052 = vpop.f32.mrf.mxu0
  %1053 = vmatprep.mubr.f32.mxu0 0.0
  %1054 = vmatmul.mubr.f32.gmra.mxu0 %v782
  %v1055 = vpop.f32.mrf.mxu0
  %v1056 = vadd.f32 %v754, %v1055
  %v1057 = vpop.f32.mrf.mxu0
  %1058 = vmatprep.mubr.f32.mxu0 0.0
  %1059 = vmatmul.mubr.f32.gmra.mxu0 %v785
  %v1060 = vpop.f32.mrf.mxu0
  %v1061 = vadd.f32 %v754, %v1060
  %v1062 = vpop.f32.mrf.mxu0
  %1063 = vmatprep.mubr.f32.mxu0 0.0
  %1064 = vmatmul.mubr.f32.gmra.mxu0 %v788
  %v1065 = vpop.f32.mrf.mxu0
  %v1066 = vadd.f32 %v754, %v1065
  %v1067 = vpop.f32.mrf.mxu0
  %1068 = vmatprep.mubr.f32.mxu0 0.0
  %1069 = vmatmul.mubr.f32.gmra.mxu0 %v791
  %v1070 = vpop.f32.mrf.mxu0
  %v1071 = vadd.f32 %v754, %v1070
  %v1072 = vpop.f32.mrf.mxu0
  %1073 = vmatprep.mubr.f32.mxu0 0.0
  %1074 = vmatmul.mubr.f32.gmra.mxu0 %v794
  %v1075 = vpop.f32.mrf.mxu0
  %v1076 = vadd.f32 %v754, %v1075
  %v1077 = vpop.f32.mrf.mxu0
  %1078 = vmatprep.mubr.f32.mxu0 0.0
  %1079 = vmatmul.mubr.f32.gmra.mxu0 %v797
  %v1080 = vpop.f32.mrf.mxu0
  %v1081 = vadd.f32 %v754, %v1080
  %v1082 = vpop.f32.mrf.mxu0
  %1083 = vmatprep.mubr.f32.mxu0 0.0
  %1084 = vmatmul.mubr.f32.gmra.mxu0 %v800
  %v1085 = vpop.f32.mrf.mxu0
  %v1086 = vadd.f32 %v754, %v1085
  %v1087 = vpop.f32.mrf.mxu0
  %1088 = vmatprep.mubr.f32.mxu0 0.0
  %1089 = vmatmul.mubr.f32.gmra.mxu0 %v803
  %v1090 = vpop.f32.mrf.mxu0
  %v1091 = vadd.f32 %v754, %v1090
  %v1092 = vpop.f32.mrf.mxu0
  %1093 = vmatprep.mubr.f32.mxu0 0.0
  %1094 = vmatmul.mubr.f32.gmra.mxu0 %v806
  %v1095 = vpop.f32.mrf.mxu0
  %v1096 = vadd.f32 %v754, %v1095
  %v1097 = vpop.f32.mrf.mxu0
  %1098 = vmatprep.mubr.f32.mxu0 0.0
  %1099 = vmatmul.mubr.f32.gmra.mxu0 %v809
  %v1100 = vpop.f32.mrf.mxu0
  %v1101 = vadd.f32 %v754, %v1100
  %v1102 = vpop.f32.mrf.mxu0
  %1103 = vmatprep.mubr.f32.mxu0 0.0
  %1104 = vmatmul.mubr.f32.gmra.mxu0 %v812
  %v1105 = vpop.f32.mrf.mxu0
  %v1106 = vadd.f32 %v754, %v1105
  %v1107 = vpop.f32.mrf.mxu0
  %1108 = vmatprep.mubr.f32.mxu0 0.0
  %1109 = vmatmul.mubr.f32.gmra.mxu0 %v815
  %v1110 = vpop.f32.mrf.mxu0
  %v1111 = vadd.f32 %v754, %v1110
  %v1112 = vpop.f32.mrf.mxu0
  %1113 = vmatprep.mubr.f32.mxu0 0.0
  %1114 = vmatmul.mubr.f32.gmra.mxu0 %v818
  %v1115 = vpop.f32.mrf.mxu0
  %v1116 = vadd.f32 %v754, %v1115
  %v1117 = vpop.f32.mrf.mxu0
  %1118 = vmatprep.mubr.f32.mxu0 0.0
  %1119 = vmatmul.mubr.f32.gmra.mxu0 %v821
  %v1120 = vpop.f32.mrf.mxu0
  %v1121 = vadd.f32 %v754, %v1120
  %v1122 = vpop.f32.mrf.mxu0
  %1123 = vmatprep.mubr.f32.mxu0 0.0
  %1124 = vmatmul.mubr.f32.gmra.mxu0 %v824
  %v1125 = vpop.f32.mrf.mxu0
  %v1126 = vadd.f32 %v754, %v1125
  %v1127 = vpop.f32.mrf.mxu0
  %1128 = vmatprep.mubr.f32.mxu0 0.0
  %1129 = vmatmul.mubr.f32.gmra.mxu0 %v827
  %v1130 = vpop.f32.mrf.mxu0
  %v1131 = vadd.f32 %v754, %v1130
  %v1132 = vpop.f32.mrf.mxu0
  %1133 = vmatprep.mubr.f32.mxu0 0.0
  %1134 = vmatmul.mubr.f32.gmra.mxu0 %v830
  %v1135 = vpop.f32.mrf.mxu0
  %v1136 = vadd.f32 %v754, %v1135
  %v1137 = vpop.f32.mrf.mxu0
  %1138 = vmatprep.mubr.f32.mxu0 0.0
  %1139 = vmatmul.mubr.f32.gmra.mxu0 %v833
  %v1140 = vpop.f32.mrf.mxu0
  %v1141 = vadd.f32 %v754, %v1140
  %v1142 = vpop.f32.mrf.mxu0
  %1143 = vmatprep.mubr.f32.mxu0 0.0
  %1144 = vmatmul.mubr.f32.gmra.mxu0 %v836
  %v1145 = vpop.f32.mrf.mxu0
  %v1146 = vadd.f32 %v754, %v1145
  %v1147 = vpop.f32.mrf.mxu0
  %1148 = vmatprep.mubr.f32.mxu0 0.0
  %1149 = vmatmul.mubr.f32.gmra.mxu0 %v839
  %v1150 = vpop.f32.mrf.mxu0
  %v1151 = vadd.f32 %v754, %v1150
  %v1152 = vpop.f32.mrf.mxu0
  %1153 = vmatprep.mubr.f32.mxu0 0.0
  %1154 = vmatmul.mubr.f32.gmra.mxu0 %v842
  %v1155 = vpop.f32.mrf.mxu0
  %v1156 = vadd.f32 %v754, %v1155
  %v1157 = vpop.f32.mrf.mxu0
  %1158 = vmatprep.mubr.f32.mxu0 0.0
  %1159 = vmatmul.mubr.f32.gmra.mxu0 %v845
  %v1160 = vpop.f32.mrf.mxu0
  %v1161 = vadd.f32 %v754, %v1160
  %v1162 = vpop.f32.mrf.mxu0
  %1163 = vmatprep.mubr.f32.mxu0 0.0
  %1164 = vmatmul.mubr.f32.gmra.mxu0 %v848
  %v1165 = vpop.f32.mrf.mxu0
  %v1166 = vadd.f32 %v754, %v1165
  %v1167 = vpop.f32.mrf.mxu0
  %1168 = vmatprep.mubr.f32.mxu0 0.0
  %1169 = vmatmul.mubr.f32.gmra.mxu0 %v851
  %v1170 = vpop.f32.mrf.mxu0
  %v1171 = vadd.f32 %v754, %v1170
  %v1172 = vpop.f32.mrf.mxu0
  %1173 = vmatprep.mubr.f32.mxu0 0.0
  %1174 = vmatmul.mubr.f32.gmra.mxu0 %v854
  %v1175 = vpop.f32.mrf.mxu0
  %v1176 = vadd.f32 %v754, %v1175
  %v1177 = vpop.f32.mrf.mxu0
  %1178 = vmatprep.mubr.f32.mxu0 0.0
  %1179 = vmatmul.mubr.f32.gmra.mxu0 %v857
  %v1180 = vpop.f32.mrf.mxu0
  %v1181 = vadd.f32 %v754, %v1180
  %v1182 = vpop.f32.mrf.mxu0
  %1183 = vmatprep.mubr.f32.mxu0 0.0
  %1184 = vmatmul.mubr.f32.gmra.mxu0 %v860
  %v1185 = vpop.f32.mrf.mxu0
  %v1186 = vadd.f32 %v754, %v1185
  %v1187 = vpop.f32.mrf.mxu0
  %1188 = vmatprep.mubr.f32.mxu0 0.0
  %1189 = vmatmul.mubr.f32.gmra.mxu0 %v863
  %v1190 = vpop.f32.mrf.mxu0
  %v1191 = vadd.f32 %v754, %v1190
  %v1192 = vpop.f32.mrf.mxu0
  %1193 = vmatprep.mubr.f32.mxu0 0.0
  %1194 = vmatmul.mubr.f32.gmra.mxu0 %v866
  %v1195 = vpop.f32.mrf.mxu0
  %v1196 = vadd.f32 %v754, %v1195
  %v1197 = vpop.f32.mrf.mxu0
  %1198 = vmatprep.mubr.f32.mxu0 0.0
  %1199 = vmatmul.mubr.f32.gmra.mxu0 %v869
  %v1200 = vpop.f32.mrf.mxu0
  %v1201 = vadd.f32 %v754, %v1200
  %v1202 = vpop.f32.mrf.mxu0
  %1203 = vmatprep.mubr.f32.mxu0 0.0
  %1204 = vmatmul.mubr.f32.gmra.mxu0 %v872
  %v1205 = vpop.f32.mrf.mxu0
  %v1206 = vadd.f32 %v754, %v1205
  %v1207 = vpop.f32.mrf.mxu0
  %1208 = vmatprep.mubr.f32.mxu0 0.0
  %1209 = vmatmul.mubr.f32.gmra.mxu0 %v875
  %v1210 = vpop.f32.mrf.mxu0
  %v1211 = vadd.f32 %v754, %v1210
  %v1212 = vpop.f32.mrf.mxu0
  %1213 = vmatprep.mubr.f32.mxu0 0.0
  %1214 = vmatmul.mubr.f32.gmra.mxu0 %v878
  %v1215 = vpop.f32.mrf.mxu0
  %v1216 = vadd.f32 %v754, %v1215
  %v1217 = vpop.f32.mrf.mxu0
  %1218 = vmatprep.mubr.f32.mxu0 0.0
  %1219 = vmatmul.mubr.f32.gmra.mxu0 %v881
  %v1220 = vpop.f32.mrf.mxu0
  %v1221 = vadd.f32 %v754, %v1220
  %v1222 = vpop.f32.mrf.mxu0
  %1223 = vmatprep.mubr.f32.mxu0 0.0
  %1224 = vmatmul.mubr.f32.gmra.mxu0 %v884
  %v1225 = vpop.f32.mrf.mxu0
  %v1226 = vadd.f32 %v754, %v1225
  %v1227 = vpop.f32.mrf.mxu0
  %1228 = vmatprep.mubr.f32.mxu0 0.0
  %1229 = vmatmul.mubr.f32.gmra.mxu0 %v887
  %v1230 = vpop.f32.mrf.mxu0
  %v1231 = vadd.f32 %v754, %v1230
  %v1232 = vpop.f32.mrf.mxu0
  %1233 = vmatprep.mubr.f32.mxu0 0.0
  %1234 = vmatmul.mubr.f32.gmra.mxu0 %v890
  %v1235 = vpop.f32.mrf.mxu0
  %v1236 = vadd.f32 %v754, %v1235
  %v1237 = vpop.f32.mrf.mxu0
  %1238 = vmatprep.mubr.f32.mxu0 0.0
  %1239 = vmatmul.mubr.f32.gmra.mxu0 %v893
  %v1240 = vpop.f32.mrf.mxu0
  %v1241 = vadd.f32 %v754, %v1240
  %v1242 = vpop.f32.mrf.mxu0
  %1243 = vmatprep.mubr.f32.mxu0 0.0
  %1244 = vmatmul.mubr.f32.gmra.mxu0 %v896
  %v1245 = vpop.f32.mrf.mxu0
  %v1246 = vadd.f32 %v754, %v1245
  %v1247 = vpop.f32.mrf.mxu0
  %1248 = vmatprep.mubr.f32.mxu0 0.0
  %1249 = vmatmul.mubr.f32.gmra.mxu0 %v899
  %v1250 = vpop.f32.mrf.mxu0
  %v1251 = vadd.f32 %v754, %v1250
  %v1252 = vpop.f32.mrf.mxu0
  %1253 = vmatprep.mubr.f32.mxu0 0.0
  %1254 = vmatmul.mubr.f32.gmra.mxu0 %v902
  %v1255 = vpop.f32.mrf.mxu0
  %v1256 = vadd.f32 %v754, %v1255
  %v1257 = vpop.f32.mrf.mxu0
  %1258 = vmatprep.mubr.f32.mxu0 0.0
  %1259 = vmatmul.mubr.f32.gmra.mxu0 %v905
  %v1260 = vpop.f32.mrf.mxu0
  %v1261 = vadd.f32 %v754, %v1260
  %v1262 = vpop.f32.mrf.mxu0
  %1263 = vmatprep.mubr.f32.mxu0 0.0
  %1264 = vmatmul.mubr.f32.gmra.mxu0 %v908
  %v1265 = vpop.f32.mrf.mxu0
  %v1266 = vadd.f32 %v754, %v1265
  %v1267 = vpop.f32.mrf.mxu0
  %1268 = vmatprep.mubr.f32.mxu0 0.0
  %1269 = vmatmul.mubr.f32.gmra.mxu0 %v911
  %v1270 = vpop.f32.mrf.mxu0
  %v1271 = vadd.f32 %v754, %v1270
  %v1272 = vpop.f32.mrf.mxu0
  %1273 = vmatprep.mubr.f32.mxu0 0.0
  %1274 = vmatmul.mubr.f32.gmra.mxu0 %v914
  %v1275 = vpop.f32.mrf.mxu0
  %v1276 = vadd.f32 %v754, %v1275
  %v1277 = vpop.f32.mrf.mxu0
  %1278 = vmatprep.mubr.f32.mxu0 0.0
  %1279 = vmatmul.mubr.f32.gmra.mxu0 %v917
  %v1280 = vpop.f32.mrf.mxu0
  %v1281 = vadd.f32 %v754, %v1280
  %v1282 = vpop.f32.mrf.mxu0
  %1283 = vmatprep.mubr.f32.mxu0 0.0
  %1284 = vmatmul.mubr.f32.gmra.mxu0 %v920
  %v1285 = vpop.f32.mrf.mxu0
  %v1286 = vadd.f32 %v754, %v1285
  %v1287 = vpop.f32.mrf.mxu0
  %1288 = vmatprep.mubr.f32.mxu0 0.0
  %1289 = vmatmul.mubr.f32.gmra.mxu0 %v923
  %v1290 = vpop.f32.mrf.mxu0
  %v1291 = vadd.f32 %v754, %v1290
  %v1292 = vpop.f32.mrf.mxu0
  %1293 = vmatprep.mubr.f32.mxu0 0.0
  %1294 = vmatmul.mubr.f32.gmra.mxu0 %v926
  %v1295 = vpop.f32.mrf.mxu0
  %v1296 = vadd.f32 %v754, %v1295
  %v1297 = vpop.f32.mrf.mxu0
  %1298 = vmatprep.mubr.f32.mxu0 0.0
  %1299 = vmatmul.mubr.f32.gmra.mxu0 %v929
  %v1300 = vpop.f32.mrf.mxu0
  %v1301 = vadd.f32 %v754, %v1300
  %v1302 = vpop.f32.mrf.mxu0
  %1303 = vmatprep.mubr.f32.mxu0 0.0
  %1304 = vmatmul.mubr.f32.gmra.mxu0 %v932
  %v1305 = vpop.f32.mrf.mxu0
  %v1306 = vadd.f32 %v754, %v1305
  %v1307 = vpop.f32.mrf.mxu0
  %1308 = vmatprep.mubr.f32.mxu0 0.0
  %1309 = vmatmul.mubr.f32.gmra.mxu0 %v935
  %v1310 = vpop.f32.mrf.mxu0
  %v1311 = vadd.f32 %v754, %v1310
  %v1312 = vpop.f32.mrf.mxu0
  %1313 = vmatprep.mubr.f32.mxu0 0.0
  %1314 = vmatmul.mubr.f32.gmra.mxu0 %v938
  %v1315 = vpop.f32.mrf.mxu0
  %v1316 = vadd.f32 %v754, %v1315
  %v1317 = vpop.f32.mrf.mxu0
  %1318 = vmatprep.mubr.f32.mxu0 0.0
  %1319 = vmatmul.mubr.f32.gmra.mxu0 %v941
  %v1320 = vpop.f32.mrf.mxu0
  %v1321 = vadd.f32 %v754, %v1320
  %v1322 = vpop.f32.mrf.mxu0
  %1323 = vmatprep.mubr.f32.mxu0 0.0
  %1324 = vmatmul.mubr.f32.gmra.mxu0 %v944
  %v1325 = vpop.f32.mrf.mxu0
  %v1326 = vadd.f32 %v754, %v1325
  %v1327 = vpop.f32.mrf.mxu0
  %1328 = vmatprep.mubr.f32.mxu0 0.0
  %1329 = vmatmul.mubr.f32.gmra.mxu0 %v947
  %v1330 = vpop.f32.mrf.mxu0
  %v1331 = vadd.f32 %v754, %v1330
  %v1332 = vpop.f32.mrf.mxu0
  %1333 = vdwg.mxu0
  %v1334 = vmax.f32 %v1016, 0.0
  %v1335 = vmax.f32 %v1021, 0.0
  %v1336 = vmax.f32 %v1026, 0.0
  %v1337 = vmax.f32 %v1031, 0.0
  %v1338 = vmax.f32 %v1036, 0.0
  %v1339 = vmax.f32 %v1041, 0.0
  %v1340 = vmax.f32 %v1046, 0.0
  %v1341 = vmax.f32 %v1051, 0.0
  %v1342 = vmax.f32 %v1056, 0.0
  %v1343 = vmax.f32 %v1061, 0.0
  %v1344 = vmax.f32 %v1066, 0.0
  %v1345 = vmax.f32 %v1071, 0.0
  %v1346 = vmax.f32 %v1076, 0.0
  %v1347 = vmax.f32 %v1081, 0.0
  %v1348 = vmax.f32 %v1086, 0.0
  %v1349 = vmax.f32 %v1091, 0.0
  %v1350 = vmax.f32 %v1096, 0.0
  %v1351 = vmax.f32 %v1101, 0.0
  %v1352 = vmax.f32 %v1106, 0.0
  %v1353 = vmax.f32 %v1111, 0.0
  %v1354 = vmax.f32 %v1116, 0.0
  %v1355 = vmax.f32 %v1121, 0.0
  %v1356 = vmax.f32 %v1126, 0.0
  %v1357 = vmax.f32 %v1131, 0.0
  %v1358 = vmax.f32 %v1136, 0.0
  %v1359 = vmax.f32 %v1141, 0.0
  %v1360 = vmax.f32 %v1146, 0.0
  %v1361 = vmax.f32 %v1151, 0.0
  %v1362 = vmax.f32 %v1156, 0.0
  %v1363 = vmax.f32 %v1161, 0.0
  %v1364 = vmax.f32 %v1166, 0.0
  %v1365 = vmax.f32 %v1171, 0.0
  %v1366 = vmax.f32 %v1176, 0.0
  %v1367 = vmax.f32 %v1181, 0.0
  %v1368 = vmax.f32 %v1186, 0.0
  %v1369 = vmax.f32 %v1191, 0.0
  %v1370 = vmax.f32 %v1196, 0.0
  %v1371 = vmax.f32 %v1201, 0.0
  %v1372 = vmax.f32 %v1206, 0.0
  %v1373 = vmax.f32 %v1211, 0.0
  %v1374 = vmax.f32 %v1216, 0.0
  %v1375 = vmax.f32 %v1221, 0.0
  %v1376 = vmax.f32 %v1226, 0.0
  %v1377 = vmax.f32 %v1231, 0.0
  %v1378 = vmax.f32 %v1236, 0.0
  %v1379 = vmax.f32 %v1241, 0.0
  %v1380 = vmax.f32 %v1246, 0.0
  %v1381 = vmax.f32 %v1251, 0.0
  %v1382 = vmax.f32 %v1256, 0.0
  %v1383 = vmax.f32 %v1261, 0.0
  %v1384 = vmax.f32 %v1266, 0.0
  %v1385 = vmax.f32 %v1271, 0.0
  %v1386 = vmax.f32 %v1276, 0.0
  %v1387 = vmax.f32 %v1281, 0.0
  %v1388 = vmax.f32 %v1286, 0.0
  %v1389 = vmax.f32 %v1291, 0.0
  %v1390 = vmax.f32 %v1296, 0.0
  %v1391 = vmax.f32 %v1301, 0.0
  %v1392 = vmax.f32 %v1306, 0.0
  %v1393 = vmax.f32 %v1311, 0.0
  %v1394 = vmax.f32 %v1316, 0.0
  %v1395 = vmax.f32 %v1321, 0.0
  %v1396 = vmax.f32 %v1326, 0.0
  %v1397 = vmax.f32 %v1331, 0.0
  %v1398 = vld [vmem:[%s5] sm:$0xff]
  %v1399 = vld [vmem:[%s5 + $0x8] sm:$0xff]
  %v1400 = vld [vmem:[%s5 + $0x10] sm:$0xff]
  %v1401 = vld [vmem:[%s5 + $0x18] sm:$0xff]
  %v1402 = vld [vmem:[%s5 + $0x20] sm:$0xff]
  %v1403 = vld [vmem:[%s5 + $0x28] sm:$0xff]
  %v1404 = vld [vmem:[%s5 + $0x30] sm:$0xff]
  %v1405 = vld [vmem:[%s5 + $0x38] sm:$0xff]
  %v1406 = vld [vmem:[%s5 + $0x40] sm:$0xff]
  %v1407 = vld [vmem:[%s5 + $0x48] sm:$0xff]
  %v1408 = vld [vmem:[%s5 + $0x50] sm:$0xff]
  %v1409 = vld [vmem:[%s5 + $0x58] sm:$0xff]
  %v1410 = vld [vmem:[%s5 + $0x60] sm:$0xff]
  %v1411 = vld [vmem:[%s5 + $0x68] sm:$0xff]
  %v1412 = vld [vmem:[%s5 + $0x70] sm:$0xff]
  %v1413 = vld [vmem:[%s5 + $0x78] sm:$0xff]
  %v1414 = vld [vmem:[%s6] sm:$0x1]
  %v1416 = vlaneseq
  %v1417 = vshrl.u32 %v1416, 7
  %v1418 = vsub.s32 0, %v1417
  %v1419 = vrot.slane %v1414, %v1418
  %1421 = vmatprep.subr.mxu0 0.0
  %1422 = vmatpush1.msra.mxu0 %v1413
  %1423 = vmatprep.subr.mxu0 0.0
  %1424 = vmatpush1.msra.mxu0 %v1412
  %1425 = vmatprep.subr.mxu0 0.0
  %1426 = vmatpush1.msra.mxu0 %v1411
  %1427 = vmatprep.subr.mxu0 0.0
  %1428 = vmatpush1.msra.mxu0 %v1410
  %1429 = vmatprep.subr.mxu0 0.0
  %1430 = vmatpush1.msra.mxu0 %v1409
  %1431 = vmatprep.subr.mxu0 0.0
  %1432 = vmatpush1.msra.mxu0 %v1408
  %1433 = vmatprep.subr.mxu0 0.0
  %1434 = vmatpush1.msra.mxu0 %v1407
  %1435 = vmatprep.subr.mxu0 0.0
  %1436 = vmatpush1.msra.mxu0 %v1406
  %1437 = vmatprep.subr.mxu0 0.0
  %1438 = vmatpush1.msra.mxu0 %v1405
  %1439 = vmatprep.subr.mxu0 0.0
  %1440 = vmatpush1.msra.mxu0 %v1404
  %1441 = vmatprep.subr.mxu0 0.0
  %1442 = vmatpush1.msra.mxu0 %v1403
  %1443 = vmatprep.subr.mxu0 0.0
  %1444 = vmatpush1.msra.mxu0 %v1402
  %1445 = vmatprep.subr.mxu0 0.0
  %1446 = vmatpush1.msra.mxu0 %v1401
  %1447 = vmatprep.subr.mxu0 0.0
  %1448 = vmatpush1.msra.mxu0 %v1400
  %1449 = vmatprep.subr.mxu0 0.0
  %1450 = vmatpush1.msra.mxu0 %v1399
  %1451 = vmatprep.subr.mxu0 0.0
  %1452 = vmatpush1.msra.mxu0 %v1398
  %1453 = vmatprep.subr.mxu0 0.0
  %1454 = vmatpush2.msra.mxu0 0.0
  %1455 = vmatprep.subr.mxu0 0.0
  %1456 = vmatpush2.msra.mxu0 0.0
  %1457 = vmatprep.subr.mxu0 0.0
  %1458 = vmatpush2.msra.mxu0 0.0
  %1459 = vmatprep.subr.mxu0 0.0
  %1460 = vmatpush2.msra.mxu0 0.0
  %1461 = vmatprep.subr.mxu0 0.0
  %1462 = vmatpush2.msra.mxu0 0.0
  %1463 = vmatprep.subr.mxu0 0.0
  %1464 = vmatpush2.msra.mxu0 0.0
  %1465 = vmatprep.subr.mxu0 0.0
  %1466 = vmatpush2.msra.mxu0 0.0
  %1467 = vmatprep.subr.mxu0 0.0
  %1468 = vmatpush2.msra.mxu0 0.0
  %1469 = vmatprep.subr.mxu0 0.0
  %1470 = vmatpush2.msra.mxu0 0.0
  %1471 = vmatprep.subr.mxu0 0.0
  %1472 = vmatpush2.msra.mxu0 0.0
  %1473 = vmatprep.subr.mxu0 0.0
  %1474 = vmatpush2.msra.mxu0 0.0
  %1475 = vmatprep.subr.mxu0 0.0
  %1476 = vmatpush2.msra.mxu0 0.0
  %1477 = vmatprep.subr.mxu0 0.0
  %1478 = vmatpush2.msra.mxu0 0.0
  %1479 = vmatprep.subr.mxu0 0.0
  %1480 = vmatpush2.msra.mxu0 0.0
  %1481 = vmatprep.subr.mxu0 0.0
  %1482 = vmatpush2.msra.mxu0 0.0
  %1483 = vmatprep.subr.mxu0 0.0
  %1484 = vmatpush2.msra.mxu0 0.0
  %1485 = vmatprep.mubr.f32.mxu0 0.0
  %1486 = vmatmul.mubr.f32.gmra.mxu0 %v1334
  %v1487 = vpop.f32.mrf.mxu0
  %v1488 = vadd.f32 %v1419, %v1487
  %v1489 = vpop.f32.mrf.mxu0
  %1490 = vmatprep.mubr.f32.mxu0 0.0
  %1491 = vmatmul.mubr.f32.gmra.mxu0 %v1335
  %v1492 = vpop.f32.mrf.mxu0
  %v1493 = vadd.f32 %v1419, %v1492
  %v1494 = vpop.f32.mrf.mxu0
  %1495 = vmatprep.mubr.f32.mxu0 0.0
  %1496 = vmatmul.mubr.f32.gmra.mxu0 %v1336
  %v1497 = vpop.f32.mrf.mxu0
  %v1498 = vadd.f32 %v1419, %v1497
  %v1499 = vpop.f32.mrf.mxu0
  %1500 = vmatprep.mubr.f32.mxu0 0.0
  %1501 = vmatmul.mubr.f32.gmra.mxu0 %v1337
  %v1502 = vpop.f32.mrf.mxu0
  %v1503 = vadd.f32 %v1419, %v1502
  %v1504 = vpop.f32.mrf.mxu0
  %1505 = vmatprep.mubr.f32.mxu0 0.0
  %1506 = vmatmul.mubr.f32.gmra.mxu0 %v1338
  %v1507 = vpop.f32.mrf.mxu0
  %v1508 = vadd.f32 %v1419, %v1507
  %v1509 = vpop.f32.mrf.mxu0
  %1510 = vmatprep.mubr.f32.mxu0 0.0
  %1511 = vmatmul.mubr.f32.gmra.mxu0 %v1339
  %v1512 = vpop.f32.mrf.mxu0
  %v1513 = vadd.f32 %v1419, %v1512
  %v1514 = vpop.f32.mrf.mxu0
  %1515 = vmatprep.mubr.f32.mxu0 0.0
  %1516 = vmatmul.mubr.f32.gmra.mxu0 %v1340
  %v1517 = vpop.f32.mrf.mxu0
  %v1518 = vadd.f32 %v1419, %v1517
  %v1519 = vpop.f32.mrf.mxu0
  %1520 = vmatprep.mubr.f32.mxu0 0.0
  %1521 = vmatmul.mubr.f32.gmra.mxu0 %v1341
  %v1522 = vpop.f32.mrf.mxu0
  %v1523 = vadd.f32 %v1419, %v1522
  %v1524 = vpop.f32.mrf.mxu0
  %1525 = vmatprep.mubr.f32.mxu0 0.0
  %1526 = vmatmul.mubr.f32.gmra.mxu0 %v1342
  %v1527 = vpop.f32.mrf.mxu0
  %v1528 = vadd.f32 %v1419, %v1527
  %v1529 = vpop.f32.mrf.mxu0
  %1530 = vmatprep.mubr.f32.mxu0 0.0
  %1531 = vmatmul.mubr.f32.gmra.mxu0 %v1343
  %v1532 = vpop.f32.mrf.mxu0
  %v1533 = vadd.f32 %v1419, %v1532
  %v1534 = vpop.f32.mrf.mxu0
  %1535 = vmatprep.mubr.f32.mxu0 0.0
  %1536 = vmatmul.mubr.f32.gmra.mxu0 %v1344
  %v1537 = vpop.f32.mrf.mxu0
  %v1538 = vadd.f32 %v1419, %v1537
  %v1539 = vpop.f32.mrf.mxu0
  %1540 = vmatprep.mubr.f32.mxu0 0.0
  %1541 = vmatmul.mubr.f32.gmra.mxu0 %v1345
  %v1542 = vpop.f32.mrf.mxu0
  %v1543 = vadd.f32 %v1419, %v1542
  %v1544 = vpop.f32.mrf.mxu0
  %1545 = vmatprep.mubr.f32.mxu0 0.0
  %1546 = vmatmul.mubr.f32.gmra.mxu0 %v1346
  %v1547 = vpop.f32.mrf.mxu0
  %v1548 = vadd.f32 %v1419, %v1547
  %v1549 = vpop.f32.mrf.mxu0
  %1550 = vmatprep.mubr.f32.mxu0 0.0
  %1551 = vmatmul.mubr.f32.gmra.mxu0 %v1347
  %v1552 = vpop.f32.mrf.mxu0
  %v1553 = vadd.f32 %v1419, %v1552
  %v1554 = vpop.f32.mrf.mxu0
  %1555 = vmatprep.mubr.f32.mxu0 0.0
  %1556 = vmatmul.mubr.f32.gmra.mxu0 %v1348
  %v1557 = vpop.f32.mrf.mxu0
  %v1558 = vadd.f32 %v1419, %v1557
  %v1559 = vpop.f32.mrf.mxu0
  %1560 = vmatprep.mubr.f32.mxu0 0.0
  %1561 = vmatmul.mubr.f32.gmra.mxu0 %v1349
  %v1562 = vpop.f32.mrf.mxu0
  %v1563 = vadd.f32 %v1419, %v1562
  %v1564 = vpop.f32.mrf.mxu0
  %1565 = vmatprep.mubr.f32.mxu0 0.0
  %1566 = vmatmul.mubr.f32.gmra.mxu0 %v1350
  %v1567 = vpop.f32.mrf.mxu0
  %v1568 = vadd.f32 %v1419, %v1567
  %v1569 = vpop.f32.mrf.mxu0
  %1570 = vmatprep.mubr.f32.mxu0 0.0
  %1571 = vmatmul.mubr.f32.gmra.mxu0 %v1351
  %v1572 = vpop.f32.mrf.mxu0
  %v1573 = vadd.f32 %v1419, %v1572
  %v1574 = vpop.f32.mrf.mxu0
  %1575 = vmatprep.mubr.f32.mxu0 0.0
  %1576 = vmatmul.mubr.f32.gmra.mxu0 %v1352
  %v1577 = vpop.f32.mrf.mxu0
  %v1578 = vadd.f32 %v1419, %v1577
  %v1579 = vpop.f32.mrf.mxu0
  %1580 = vmatprep.mubr.f32.mxu0 0.0
  %1581 = vmatmul.mubr.f32.gmra.mxu0 %v1353
  %v1582 = vpop.f32.mrf.mxu0
  %v1583 = vadd.f32 %v1419, %v1582
  %v1584 = vpop.f32.mrf.mxu0
  %1585 = vmatprep.mubr.f32.mxu0 0.0
  %1586 = vmatmul.mubr.f32.gmra.mxu0 %v1354
  %v1587 = vpop.f32.mrf.mxu0
  %v1588 = vadd.f32 %v1419, %v1587
  %v1589 = vpop.f32.mrf.mxu0
  %1590 = vmatprep.mubr.f32.mxu0 0.0
  %1591 = vmatmul.mubr.f32.gmra.mxu0 %v1355
  %v1592 = vpop.f32.mrf.mxu0
  %v1593 = vadd.f32 %v1419, %v1592
  %v1594 = vpop.f32.mrf.mxu0
  %1595 = vmatprep.mubr.f32.mxu0 0.0
  %1596 = vmatmul.mubr.f32.gmra.mxu0 %v1356
  %v1597 = vpop.f32.mrf.mxu0
  %v1598 = vadd.f32 %v1419, %v1597
  %v1599 = vpop.f32.mrf.mxu0
  %1600 = vmatprep.mubr.f32.mxu0 0.0
  %1601 = vmatmul.mubr.f32.gmra.mxu0 %v1357
  %v1602 = vpop.f32.mrf.mxu0
  %v1603 = vadd.f32 %v1419, %v1602
  %v1604 = vpop.f32.mrf.mxu0
  %1605 = vmatprep.mubr.f32.mxu0 0.0
  %1606 = vmatmul.mubr.f32.gmra.mxu0 %v1358
  %v1607 = vpop.f32.mrf.mxu0
  %v1608 = vadd.f32 %v1419, %v1607
  %v1609 = vpop.f32.mrf.mxu0
  %1610 = vmatprep.mubr.f32.mxu0 0.0
  %1611 = vmatmul.mubr.f32.gmra.mxu0 %v1359
  %v1612 = vpop.f32.mrf.mxu0
  %v1613 = vadd.f32 %v1419, %v1612
  %v1614 = vpop.f32.mrf.mxu0
  %1615 = vmatprep.mubr.f32.mxu0 0.0
  %1616 = vmatmul.mubr.f32.gmra.mxu0 %v1360
  %v1617 = vpop.f32.mrf.mxu0
  %v1618 = vadd.f32 %v1419, %v1617
  %v1619 = vpop.f32.mrf.mxu0
  %1620 = vmatprep.mubr.f32.mxu0 0.0
  %1621 = vmatmul.mubr.f32.gmra.mxu0 %v1361
  %v1622 = vpop.f32.mrf.mxu0
  %v1623 = vadd.f32 %v1419, %v1622
  %v1624 = vpop.f32.mrf.mxu0
  %1625 = vmatprep.mubr.f32.mxu0 0.0
  %1626 = vmatmul.mubr.f32.gmra.mxu0 %v1362
  %v1627 = vpop.f32.mrf.mxu0
  %v1628 = vadd.f32 %v1419, %v1627
  %v1629 = vpop.f32.mrf.mxu0
  %1630 = vmatprep.mubr.f32.mxu0 0.0
  %1631 = vmatmul.mubr.f32.gmra.mxu0 %v1363
  %v1632 = vpop.f32.mrf.mxu0
  %v1633 = vadd.f32 %v1419, %v1632
  %v1634 = vpop.f32.mrf.mxu0
  %1635 = vmatprep.mubr.f32.mxu0 0.0
  %1636 = vmatmul.mubr.f32.gmra.mxu0 %v1364
  %v1637 = vpop.f32.mrf.mxu0
  %v1638 = vadd.f32 %v1419, %v1637
  %v1639 = vpop.f32.mrf.mxu0
  %1640 = vmatprep.mubr.f32.mxu0 0.0
  %1641 = vmatmul.mubr.f32.gmra.mxu0 %v1365
  %v1642 = vpop.f32.mrf.mxu0
  %v1643 = vadd.f32 %v1419, %v1642
  %v1644 = vpop.f32.mrf.mxu0
  %1645 = vmatprep.mubr.f32.mxu0 0.0
  %1646 = vmatmul.mubr.f32.gmra.mxu0 %v1366
  %v1647 = vpop.f32.mrf.mxu0
  %v1648 = vadd.f32 %v1419, %v1647
  %v1649 = vpop.f32.mrf.mxu0
  %1650 = vmatprep.mubr.f32.mxu0 0.0
  %1651 = vmatmul.mubr.f32.gmra.mxu0 %v1367
  %v1652 = vpop.f32.mrf.mxu0
  %v1653 = vadd.f32 %v1419, %v1652
  %v1654 = vpop.f32.mrf.mxu0
  %1655 = vmatprep.mubr.f32.mxu0 0.0
  %1656 = vmatmul.mubr.f32.gmra.mxu0 %v1368
  %v1657 = vpop.f32.mrf.mxu0
  %v1658 = vadd.f32 %v1419, %v1657
  %v1659 = vpop.f32.mrf.mxu0
  %1660 = vmatprep.mubr.f32.mxu0 0.0
  %1661 = vmatmul.mubr.f32.gmra.mxu0 %v1369
  %v1662 = vpop.f32.mrf.mxu0
  %v1663 = vadd.f32 %v1419, %v1662
  %v1664 = vpop.f32.mrf.mxu0
  %1665 = vmatprep.mubr.f32.mxu0 0.0
  %1666 = vmatmul.mubr.f32.gmra.mxu0 %v1370
  %v1667 = vpop.f32.mrf.mxu0
  %v1668 = vadd.f32 %v1419, %v1667
  %v1669 = vpop.f32.mrf.mxu0
  %1670 = vmatprep.mubr.f32.mxu0 0.0
  %1671 = vmatmul.mubr.f32.gmra.mxu0 %v1371
  %v1672 = vpop.f32.mrf.mxu0
  %v1673 = vadd.f32 %v1419, %v1672
  %v1674 = vpop.f32.mrf.mxu0
  %1675 = vmatprep.mubr.f32.mxu0 0.0
  %1676 = vmatmul.mubr.f32.gmra.mxu0 %v1372
  %v1677 = vpop.f32.mrf.mxu0
  %v1678 = vadd.f32 %v1419, %v1677
  %v1679 = vpop.f32.mrf.mxu0
  %1680 = vmatprep.mubr.f32.mxu0 0.0
  %1681 = vmatmul.mubr.f32.gmra.mxu0 %v1373
  %v1682 = vpop.f32.mrf.mxu0
  %v1683 = vadd.f32 %v1419, %v1682
  %v1684 = vpop.f32.mrf.mxu0
  %1685 = vmatprep.mubr.f32.mxu0 0.0
  %1686 = vmatmul.mubr.f32.gmra.mxu0 %v1374
  %v1687 = vpop.f32.mrf.mxu0
  %v1688 = vadd.f32 %v1419, %v1687
  %v1689 = vpop.f32.mrf.mxu0
  %1690 = vmatprep.mubr.f32.mxu0 0.0
  %1691 = vmatmul.mubr.f32.gmra.mxu0 %v1375
  %v1692 = vpop.f32.mrf.mxu0
  %v1693 = vadd.f32 %v1419, %v1692
  %v1694 = vpop.f32.mrf.mxu0
  %1695 = vmatprep.mubr.f32.mxu0 0.0
  %1696 = vmatmul.mubr.f32.gmra.mxu0 %v1376
  %v1697 = vpop.f32.mrf.mxu0
  %v1698 = vadd.f32 %v1419, %v1697
  %v1699 = vpop.f32.mrf.mxu0
  %1700 = vmatprep.mubr.f32.mxu0 0.0
  %1701 = vmatmul.mubr.f32.gmra.mxu0 %v1377
  %v1702 = vpop.f32.mrf.mxu0
  %v1703 = vadd.f32 %v1419, %v1702
  %v1704 = vpop.f32.mrf.mxu0
  %1705 = vmatprep.mubr.f32.mxu0 0.0
  %1706 = vmatmul.mubr.f32.gmra.mxu0 %v1378
  %v1707 = vpop.f32.mrf.mxu0
  %v1708 = vadd.f32 %v1419, %v1707
  %v1709 = vpop.f32.mrf.mxu0
  %1710 = vmatprep.mubr.f32.mxu0 0.0
  %1711 = vmatmul.mubr.f32.gmra.mxu0 %v1379
  %v1712 = vpop.f32.mrf.mxu0
  %v1713 = vadd.f32 %v1419, %v1712
  %v1714 = vpop.f32.mrf.mxu0
  %1715 = vmatprep.mubr.f32.mxu0 0.0
  %1716 = vmatmul.mubr.f32.gmra.mxu0 %v1380
  %v1717 = vpop.f32.mrf.mxu0
  %v1718 = vadd.f32 %v1419, %v1717
  %v1719 = vpop.f32.mrf.mxu0
  %1720 = vmatprep.mubr.f32.mxu0 0.0
  %1721 = vmatmul.mubr.f32.gmra.mxu0 %v1381
  %v1722 = vpop.f32.mrf.mxu0
  %v1723 = vadd.f32 %v1419, %v1722
  %v1724 = vpop.f32.mrf.mxu0
  %1725 = vmatprep.mubr.f32.mxu0 0.0
  %1726 = vmatmul.mubr.f32.gmra.mxu0 %v1382
  %v1727 = vpop.f32.mrf.mxu0
  %v1728 = vadd.f32 %v1419, %v1727
  %v1729 = vpop.f32.mrf.mxu0
  %1730 = vmatprep.mubr.f32.mxu0 0.0
  %1731 = vmatmul.mubr.f32.gmra.mxu0 %v1383
  %v1732 = vpop.f32.mrf.mxu0
  %v1733 = vadd.f32 %v1419, %v1732
  %v1734 = vpop.f32.mrf.mxu0
  %1735 = vmatprep.mubr.f32.mxu0 0.0
  %1736 = vmatmul.mubr.f32.gmra.mxu0 %v1384
  %v1737 = vpop.f32.mrf.mxu0
  %v1738 = vadd.f32 %v1419, %v1737
  %v1739 = vpop.f32.mrf.mxu0
  %1740 = vmatprep.mubr.f32.mxu0 0.0
  %1741 = vmatmul.mubr.f32.gmra.mxu0 %v1385
  %v1742 = vpop.f32.mrf.mxu0
  %v1743 = vadd.f32 %v1419, %v1742
  %v1744 = vpop.f32.mrf.mxu0
  %1745 = vmatprep.mubr.f32.mxu0 0.0
  %1746 = vmatmul.mubr.f32.gmra.mxu0 %v1386
  %v1747 = vpop.f32.mrf.mxu0
  %v1748 = vadd.f32 %v1419, %v1747
  %v1749 = vpop.f32.mrf.mxu0
  %1750 = vmatprep.mubr.f32.mxu0 0.0
  %1751 = vmatmul.mubr.f32.gmra.mxu0 %v1387
  %v1752 = vpop.f32.mrf.mxu0
  %v1753 = vadd.f32 %v1419, %v1752
  %v1754 = vpop.f32.mrf.mxu0
  %1755 = vmatprep.mubr.f32.mxu0 0.0
  %1756 = vmatmul.mubr.f32.gmra.mxu0 %v1388
  %v1757 = vpop.f32.mrf.mxu0
  %v1758 = vadd.f32 %v1419, %v1757
  %v1759 = vpop.f32.mrf.mxu0
  %1760 = vmatprep.mubr.f32.mxu0 0.0
  %1761 = vmatmul.mubr.f32.gmra.mxu0 %v1389
  %v1762 = vpop.f32.mrf.mxu0
  %v1763 = vadd.f32 %v1419, %v1762
  %v1764 = vpop.f32.mrf.mxu0
  %1765 = vmatprep.mubr.f32.mxu0 0.0
  %1766 = vmatmul.mubr.f32.gmra.mxu0 %v1390
  %v1767 = vpop.f32.mrf.mxu0
  %v1768 = vadd.f32 %v1419, %v1767
  %v1769 = vpop.f32.mrf.mxu0
  %1770 = vmatprep.mubr.f32.mxu0 0.0
  %1771 = vmatmul.mubr.f32.gmra.mxu0 %v1391
  %v1772 = vpop.f32.mrf.mxu0
  %v1773 = vadd.f32 %v1419, %v1772
  %v1774 = vpop.f32.mrf.mxu0
  %1775 = vmatprep.mubr.f32.mxu0 0.0
  %1776 = vmatmul.mubr.f32.gmra.mxu0 %v1392
  %v1777 = vpop.f32.mrf.mxu0
  %v1778 = vadd.f32 %v1419, %v1777
  %v1779 = vpop.f32.mrf.mxu0
  %1780 = vmatprep.mubr.f32.mxu0 0.0
  %1781 = vmatmul.mubr.f32.gmra.mxu0 %v1393
  %v1782 = vpop.f32.mrf.mxu0
  %v1783 = vadd.f32 %v1419, %v1782
  %v1784 = vpop.f32.mrf.mxu0
  %1785 = vmatprep.mubr.f32.mxu0 0.0
  %1786 = vmatmul.mubr.f32.gmra.mxu0 %v1394
  %v1787 = vpop.f32.mrf.mxu0
  %v1788 = vadd.f32 %v1419, %v1787
  %v1789 = vpop.f32.mrf.mxu0
  %1790 = vmatprep.mubr.f32.mxu0 0.0
  %1791 = vmatmul.mubr.f32.gmra.mxu0 %v1395
  %v1792 = vpop.f32.mrf.mxu0
  %v1793 = vadd.f32 %v1419, %v1792
  %v1794 = vpop.f32.mrf.mxu0
  %1795 = vmatprep.mubr.f32.mxu0 0.0
  %1796 = vmatmul.mubr.f32.gmra.mxu0 %v1396
  %v1797 = vpop.f32.mrf.mxu0
  %v1798 = vadd.f32 %v1419, %v1797
  %v1799 = vpop.f32.mrf.mxu0
  %1800 = vmatprep.mubr.f32.mxu0 0.0
  %1801 = vmatmul.mubr.f32.gmra.mxu0 %v1397
  %v1802 = vpop.f32.mrf.mxu0
  %v1803 = vadd.f32 %v1419, %v1802
  %v1804 = vpop.f32.mrf.mxu0
  %1805 = vdwg.mxu0
  %vm1806 = vcmask 31744
  %1807 = vst.msk [vmem:[%s7] sm:$0xff] %vm1806, %v1488
  %1808 = vst.msk [vmem:[%s7 + $0x8] sm:$0xff] %vm1806, %v1493
  %1809 = vst.msk [vmem:[%s7 + $0x10] sm:$0xff] %vm1806, %v1498
  %1810 = vst.msk [vmem:[%s7 + $0x18] sm:$0xff] %vm1806, %v1503
  %1811 = vst.msk [vmem:[%s7 + $0x20] sm:$0xff] %vm1806, %v1508
  %1812 = vst.msk [vmem:[%s7 + $0x28] sm:$0xff] %vm1806, %v1513
  %1813 = vst.msk [vmem:[%s7 + $0x30] sm:$0xff] %vm1806, %v1518
  %1814 = vst.msk [vmem:[%s7 + $0x38] sm:$0xff] %vm1806, %v1523
  %1815 = vst.msk [vmem:[%s7 + $0x40] sm:$0xff] %vm1806, %v1528
  %1816 = vst.msk [vmem:[%s7 + $0x48] sm:$0xff] %vm1806, %v1533
  %1817 = vst.msk [vmem:[%s7 + $0x50] sm:$0xff] %vm1806, %v1538
  %1818 = vst.msk [vmem:[%s7 + $0x58] sm:$0xff] %vm1806, %v1543
  %1819 = vst.msk [vmem:[%s7 + $0x60] sm:$0xff] %vm1806, %v1548
  %1820 = vst.msk [vmem:[%s7 + $0x68] sm:$0xff] %vm1806, %v1553
  %1821 = vst.msk [vmem:[%s7 + $0x70] sm:$0xff] %vm1806, %v1558
  %1822 = vst.msk [vmem:[%s7 + $0x78] sm:$0xff] %vm1806, %v1563
  %1823 = vst.msk [vmem:[%s7 + $0x80] sm:$0xff] %vm1806, %v1568
  %1824 = vst.msk [vmem:[%s7 + $0x88] sm:$0xff] %vm1806, %v1573
  %1825 = vst.msk [vmem:[%s7 + $0x90] sm:$0xff] %vm1806, %v1578
  %1826 = vst.msk [vmem:[%s7 + $0x98] sm:$0xff] %vm1806, %v1583
  %1827 = vst.msk [vmem:[%s7 + $0xa0] sm:$0xff] %vm1806, %v1588
  %1828 = vst.msk [vmem:[%s7 + $0xa8] sm:$0xff] %vm1806, %v1593
  %1829 = vst.msk [vmem:[%s7 + $0xb0] sm:$0xff] %vm1806, %v1598
  %1830 = vst.msk [vmem:[%s7 + $0xb8] sm:$0xff] %vm1806, %v1603
  %1831 = vst.msk [vmem:[%s7 + $0xc0] sm:$0xff] %vm1806, %v1608
  %1832 = vst.msk [vmem:[%s7 + $0xc8] sm:$0xff] %vm1806, %v1613
  %1833 = vst.msk [vmem:[%s7 + $0xd0] sm:$0xff] %vm1806, %v1618
  %1834 = vst.msk [vmem:[%s7 + $0xd8] sm:$0xff] %vm1806, %v1623
  %1835 = vst.msk [vmem:[%s7 + $0xe0] sm:$0xff] %vm1806, %v1628
  %1836 = vst.msk [vmem:[%s7 + $0xe8] sm:$0xff] %vm1806, %v1633
  %1837 = vst.msk [vmem:[%s7 + $0xf0] sm:$0xff] %vm1806, %v1638
  %1838 = vst.msk [vmem:[%s7 + $0xf8] sm:$0xff] %vm1806, %v1643
  %1839 = vst.msk [vmem:[%s7 + $0x100] sm:$0xff] %vm1806, %v1648
  %1840 = vst.msk [vmem:[%s7 + $0x108] sm:$0xff] %vm1806, %v1653
  %1841 = vst.msk [vmem:[%s7 + $0x110] sm:$0xff] %vm1806, %v1658
  %1842 = vst.msk [vmem:[%s7 + $0x118] sm:$0xff] %vm1806, %v1663
  %1843 = vst.msk [vmem:[%s7 + $0x120] sm:$0xff] %vm1806, %v1668
  %1844 = vst.msk [vmem:[%s7 + $0x128] sm:$0xff] %vm1806, %v1673
  %1845 = vst.msk [vmem:[%s7 + $0x130] sm:$0xff] %vm1806, %v1678
  %1846 = vst.msk [vmem:[%s7 + $0x138] sm:$0xff] %vm1806, %v1683
  %1847 = vst.msk [vmem:[%s7 + $0x140] sm:$0xff] %vm1806, %v1688
  %1848 = vst.msk [vmem:[%s7 + $0x148] sm:$0xff] %vm1806, %v1693
  %1849 = vst.msk [vmem:[%s7 + $0x150] sm:$0xff] %vm1806, %v1698
  %1850 = vst.msk [vmem:[%s7 + $0x158] sm:$0xff] %vm1806, %v1703
  %1851 = vst.msk [vmem:[%s7 + $0x160] sm:$0xff] %vm1806, %v1708
  %1852 = vst.msk [vmem:[%s7 + $0x168] sm:$0xff] %vm1806, %v1713
  %1853 = vst.msk [vmem:[%s7 + $0x170] sm:$0xff] %vm1806, %v1718
  %1854 = vst.msk [vmem:[%s7 + $0x178] sm:$0xff] %vm1806, %v1723
  %1855 = vst.msk [vmem:[%s7 + $0x180] sm:$0xff] %vm1806, %v1728
  %1856 = vst.msk [vmem:[%s7 + $0x188] sm:$0xff] %vm1806, %v1733
  %1857 = vst.msk [vmem:[%s7 + $0x190] sm:$0xff] %vm1806, %v1738
  %1858 = vst.msk [vmem:[%s7 + $0x198] sm:$0xff] %vm1806, %v1743
  %1859 = vst.msk [vmem:[%s7 + $0x1a0] sm:$0xff] %vm1806, %v1748
  %1860 = vst.msk [vmem:[%s7 + $0x1a8] sm:$0xff] %vm1806, %v1753
  %1861 = vst.msk [vmem:[%s7 + $0x1b0] sm:$0xff] %vm1806, %v1758
  %1862 = vst.msk [vmem:[%s7 + $0x1b8] sm:$0xff] %vm1806, %v1763
  %1863 = vst.msk [vmem:[%s7 + $0x1c0] sm:$0xff] %vm1806, %v1768
  %1864 = vst.msk [vmem:[%s7 + $0x1c8] sm:$0xff] %vm1806, %v1773
  %1865 = vst.msk [vmem:[%s7 + $0x1d0] sm:$0xff] %vm1806, %v1778
  %1866 = vst.msk [vmem:[%s7 + $0x1d8] sm:$0xff] %vm1806, %v1783
  %1867 = vst.msk [vmem:[%s7 + $0x1e0] sm:$0xff] %vm1806, %v1788
  %1868 = vst.msk [vmem:[%s7 + $0x1e8] sm:$0xff] %vm1806, %v1793
  %1869 = vst.msk [vmem:[%s7 + $0x1f0] sm:$0xff] %vm1806, %v1798
  %1870 = vst.msk [vmem:[%s7 + $0x1f8] sm:$0xff] %vm1806, %v1803
  // Predicated region
  $region30: #{tpu_custom_call.1} parent=0 // pred_check
    _
  $region31: #{tpu_custom_call.1} parent=0 // pred_check_branch
    %1872 = sbr.rel (0) target = $region33
  $region32: #{tpu_custom_call.1} parent=0 // pred_region
    _
  $region33: #{tpu_custom_call.1} parent=0 // pred_fallthru
    _
  // Predicated region
  $region34: #{tpu_custom_call.1} parent=0 // pred_check
    _
  $region35: #{tpu_custom_call.1} parent=0 // pred_check_branch
    %1874 = sbr.rel (0) target = $region37
  $region36: #{tpu_custom_call.1} parent=0 // pred_region
    _
  $region37: #{tpu_custom_call.1} parent=0 // pred_fallthru
    _

</llo_original>
